<compile_context>
chip_gen: v7x
topology: tpu7x:2x2x1
jax: 0.10.0
libtpu: 0.0.40
codegen_flags: <defaults>
</compile_context>

<pallas_src>
import functools
import math

import jax
import jax.numpy as jnp
from jax.experimental import pallas as pl
from jax.experimental.pallas import tpu as pltpu


# ------------------------------- kernel -------------------------------------


def _gelu_exact(x):
    # PyTorch nn.GELU() default = exact erf-based GELU.
    return 0.5 * x * (1.0 + jax.lax.erf(x * (1.0 / math.sqrt(2.0))))


def _mlp(h, w1_ref, b1_ref, w2_ref, b2_ref):
    """fc1 -> GELU -> (dropout p=0 is identity) -> fc2 (+ residual if square)."""
    in_dim, out_dim = w1_ref.shape
    t = jnp.dot(h, w1_ref[...], preferred_element_type=jnp.float32) + b1_ref[...]
    t = _gelu_exact(t)
    t = jnp.dot(t, w2_ref[...], preferred_element_type=jnp.float32) + b2_ref[...]
    if in_dim == out_dim:
        t = t + h
    return t


def _fused_vae_kernel(n_enc, n_dec, latent_dim, *refs):
    # Argument layout (inputs then outputs):
    #   x, eps,
    #   [w1, b1, w2, b2] * n_enc, [w1, b1, w2, b2] * n_dec,
    #   out, sample, kl
    x_ref, eps_ref = refs[0], refs[1]
    idx = 2
    enc_blocks = []
    for _ in range(n_enc):
        enc_blocks.append(refs[idx:idx + 4])
        idx += 4
    dec_blocks = []
    for _ in range(n_dec):
        dec_blocks.append(refs[idx:idx + 4])
        idx += 4
    out_ref, sample_ref, kl_ref = refs[idx], refs[idx + 1], refs[idx + 2]

    # ---- encoder (layer loop unrolled at trace time) ----
    h = x_ref[...]
    for (w1, b1, w2, b2) in enc_blocks:
        h = _mlp(h, w1, b1, w2, b2)

    # ---- latent: tensor_split(2, dim=1), reparam trick, KL loss ----
    m = h[:, :latent_dim]
    std = h[:, latent_dim:]          # (log-variance, named `std` as in reference)
    eps = eps_ref[...]
    z = m + jnp.exp(0.5 * std) * eps
    per_sample = -0.5 * jnp.sum(1.0 + std - jnp.exp(std) - m * m,
                                axis=1, keepdims=True)         # (B, 1)
    kl_ref[...] = jnp.mean(per_sample, axis=0, keepdims=True)  # (1, 1)

    # ---- decoder ----
    d = z
    for (w1, b1, w2, b2) in dec_blocks:
        d = _mlp(d, w1, b1, w2, b2)

    out_ref[...] = d
    # sigmoid(d) > 0.5  <=>  d > 0  (single VPU compare, no EUP sigmoid).
    sample_ref[...] = (d > 0.0).astype(jnp.float32)


# ----------------------------- pallas wrapper --------------------------------


def linear_vae_forward(enc_params, dec_params, x, noise_key):
    """Fused forward. Returns (out, sample, kl_loss) matching the torch module."""
    B, C, H, W = x.shape
    xf = x.reshape(B, -1).astype(jnp.float32)
    in_dim = xf.shape[1]
    latent_dim = enc_params[-1][1][0].shape[1] // 2

    eps = jax.random.normal(noise_key, (B, latent_dim), dtype=jnp.float32)

    flat_params = []
    for (w1, b1), (w2, b2) in enc_params + dec_params:
        flat_params += [w1, b1.reshape(1, -1), w2, b2.reshape(1, -1)]

    n_enc, n_dec = len(enc_params), len(dec_params)
    n_inputs = 2 + len(flat_params)

    vmem = pl.BlockSpec(memory_space=pltpu.MemorySpace.VMEM)
    kernel = functools.partial(_fused_vae_kernel, n_enc, n_dec, latent_dim)

    out, sample, kl = pl.pallas_call(
        kernel,
        out_shape=(
            jax.ShapeDtypeStruct((B, in_dim), jnp.float32),
            jax.ShapeDtypeStruct((B, in_dim), jnp.float32),
            jax.ShapeDtypeStruct((1, 1), jnp.float32),
        ),
        in_specs=[vmem] * n_inputs,
        out_specs=(vmem, vmem, vmem),
    )(xf, eps, *flat_params)

    return out.reshape(B, C, H, W), sample.reshape(B, C, H, W), kl[0, 0]


# ----------------------------- parameter init --------------------------------


def init_linear(key, in_dim, out_dim):
    # PyTorch nn.Linear default init: U(-1/sqrt(in), 1/sqrt(in)).
    k_w, k_b = jax.random.split(key)
    bound = 1.0 / math.sqrt(in_dim)
    w = jax.random.uniform(k_w, (in_dim, out_dim), jnp.float32, -bound, bound)
    b = jax.random.uniform(k_b, (out_dim,), jnp.float32, -bound, bound)
    return w, b


def init_mlp(key, in_dim, out_dim):
    k1, k2 = jax.random.split(key)
    return (init_linear(k1, in_dim, out_dim), init_linear(k2, out_dim, out_dim))


def init_linear_vae(key, ch, shape, hidden_dim, layer, latent_dim):
    in_dim = ch * shape[0] * shape[1]
    enc_dims = [in_dim] + [hidden_dim] * layer + [latent_dim * 2]
    dec_dims = [latent_dim] + [hidden_dim] * layer + [in_dim]
    n_enc, n_dec = len(enc_dims) - 1, len(dec_dims) - 1
    keys = jax.random.split(key, n_enc + n_dec)
    enc_params = [init_mlp(keys[i], enc_dims[i], enc_dims[i + 1])
                  for i in range(n_enc)]
    dec_params = [init_mlp(keys[n_enc + i], dec_dims[i], dec_dims[i + 1])
                  for i in range(n_dec)]
    return enc_params, dec_params


# --------------------------- pure-JAX reference -------------------------------


def _ref_forward(enc_params, dec_params, x, noise_key):
    B, C, H, W = x.shape
    hi = jax.lax.Precision.HIGHEST

    def mlp(h, block):
        (w1, b1), (w2, b2) = block
        t = _gelu_exact(jnp.dot(h, w1, precision=hi) + b1)
        t = jnp.dot(t, w2, precision=hi) + b2
        if w1.shape[0] == w1.shape[1]:
            t = t + h
        return t

    h = x.reshape(B, -1)
    for block in enc_params:
        h = mlp(h, block)
    latent_dim = h.shape[1] // 2
    m, std = h[:, :latent_dim], h[:, latent_dim:]
    eps = jax.random.normal(noise_key, std.shape, dtype=jnp.float32)
    z = m + jnp.exp(0.5 * std) * eps
    kl = -0.5 * jnp.mean(jnp.sum(1.0 + std - jnp.exp(std) - m * m, axis=1))
    d = z
    for block in dec_params:
        d = mlp(d, block)
    out = d.reshape(B, C, H, W)
    sample = (jax.nn.sigmoid(out) > 0.5).astype(jnp.float32)
    return out, sample, kl


# --------------------------------- main ---------------------------------------


if __name__ == "__main__":
    # Small config consistent with the module's constructor.
    B, C, H, W = 2, 1, 16, 16
    hidden_dim, layer, latent_dim = 32, 2, 16

    root = jax.random.PRNGKey(0)
    k_param, k_x, k_noise = jax.random.split(root, 3)

    enc_params, dec_params = init_linear_vae(
        k_param, ch=C, shape=(H, W), hidden_dim=hidden_dim,
        layer=layer, latent_dim=latent_dim)

    x = jax.random.normal(k_x, (B, C, H, W), dtype=jnp.float32)

    out, sample, kl_loss = linear_vae_forward(enc_params, dec_params, x, k_noise)
    jax.block_until_ready((out, sample, kl_loss))

    assert out.shape == (B, C, H, W)
    assert sample.shape == (B, C, H, W)
    assert kl_loss.shape == ()
    assert bool(jnp.all(jnp.isfinite(out)))

    # Correctness vs. pure-JAX reference (same eps drawn from the same key).
    ref_out, ref_sample, ref_kl = _ref_forward(enc_params, dec_params, x, k_noise)
    assert bool(jnp.allclose(out, ref_out, rtol=1e-3, atol=1e-3))
    assert bool(jnp.allclose(kl_loss, ref_kl, rtol=1e-3, atol=1e-3))
    assert bool(jnp.all((sample == 0.0) | (sample == 1.0)))

    print("KERNEL_OK")
</pallas_src>

<mosaic_0001>
module attributes {stable_mosaic.version = 11 : i64} {
  func.func @_fused_vae_kernel(%arg0: memref<2x256xf32, #tpu.memory_space<vmem>>, %arg1: memref<2x16xf32, #tpu.memory_space<vmem>>, %arg2: memref<256x32xf32, #tpu.memory_space<vmem>>, %arg3: memref<1x32xf32, #tpu.memory_space<vmem>>, %arg4: memref<32x32xf32, #tpu.memory_space<vmem>>, %arg5: memref<1x32xf32, #tpu.memory_space<vmem>>, %arg6: memref<32x32xf32, #tpu.memory_space<vmem>>, %arg7: memref<1x32xf32, #tpu.memory_space<vmem>>, %arg8: memref<32x32xf32, #tpu.memory_space<vmem>>, %arg9: memref<1x32xf32, #tpu.memory_space<vmem>>, %arg10: memref<32x32xf32, #tpu.memory_space<vmem>>, %arg11: memref<1x32xf32, #tpu.memory_space<vmem>>, %arg12: memref<32x32xf32, #tpu.memory_space<vmem>>, %arg13: memref<1x32xf32, #tpu.memory_space<vmem>>, %arg14: memref<16x32xf32, #tpu.memory_space<vmem>>, %arg15: memref<1x32xf32, #tpu.memory_space<vmem>>, %arg16: memref<32x32xf32, #tpu.memory_space<vmem>>, %arg17: memref<1x32xf32, #tpu.memory_space<vmem>>, %arg18: memref<32x32xf32, #tpu.memory_space<vmem>>, %arg19: memref<1x32xf32, #tpu.memory_space<vmem>>, %arg20: memref<32x32xf32, #tpu.memory_space<vmem>>, %arg21: memref<1x32xf32, #tpu.memory_space<vmem>>, %arg22: memref<32x256xf32, #tpu.memory_space<vmem>>, %arg23: memref<1x256xf32, #tpu.memory_space<vmem>>, %arg24: memref<256x256xf32, #tpu.memory_space<vmem>>, %arg25: memref<1x256xf32, #tpu.memory_space<vmem>>, %arg26: memref<2x256xf32, #tpu.memory_space<vmem>>, %arg27: memref<2x256xf32, #tpu.memory_space<vmem>>, %arg28: memref<1x1xf32, #tpu.memory_space<vmem>>) attributes {dimension_semantics = [], scalar_prefetch = 0 : i64, scratch_operands = 0 : i64, tpu.core_type = #tpu.core_type<tc>} {
    %c0 = arith.constant 0 : index
    %c0_0 = arith.constant 0 : index
    %0 = vector.load %arg0[%c0, %c0_0] : memref<2x256xf32, #tpu.memory_space<vmem>>, vector<2x256xf32>
    %c0_1 = arith.constant 0 : index
    %c0_2 = arith.constant 0 : index
    %1 = vector.load %arg2[%c0_1, %c0_2] : memref<256x32xf32, #tpu.memory_space<vmem>>, vector<256x32xf32>
    %cst = arith.constant dense<0.000000e+00> : vector<2x32xf32>
    %2 = tpu.matmul %0, %1, %cst {dimension_numbers = #tpu.dot_dimension_numbers<[1], [0], [0], [1], [0, 0, 1, 1], [], []>} : vector<2x256xf32>, vector<256x32xf32>, vector<2x32xf32> -> vector<2x32xf32>
    %c0_3 = arith.constant 0 : index
    %c0_4 = arith.constant 0 : index
    %3 = vector.load %arg3[%c0_3, %c0_4] : memref<1x32xf32, #tpu.memory_space<vmem>>, vector<1x32xf32>
    %4 = vector.broadcast %3 : vector<1x32xf32> to vector<2x32xf32>
    %5 = arith.addf %2, %4 : vector<2x32xf32>
    %cst_5 = arith.constant 5.000000e-01 : f32
    %6 = vector.broadcast %cst_5 : f32 to vector<2x32xf32>
    %7 = arith.mulf %6, %5 : vector<2x32xf32>
    %cst_6 = arith.constant 0.707106769 : f32
    %8 = vector.broadcast %cst_6 : f32 to vector<2x32xf32>
    %9 = arith.mulf %5, %8 : vector<2x32xf32>
    %10 = math.erf %9 : vector<2x32xf32>
    %cst_7 = arith.constant 1.000000e+00 : f32
    %11 = vector.broadcast %cst_7 : f32 to vector<2x32xf32>
    %12 = arith.addf %11, %10 : vector<2x32xf32>
    %13 = arith.mulf %7, %12 : vector<2x32xf32>
    %c0_8 = arith.constant 0 : index
    %c0_9 = arith.constant 0 : index
    %14 = vector.load %arg4[%c0_8, %c0_9] : memref<32x32xf32, #tpu.memory_space<vmem>>, vector<32x32xf32>
    %cst_10 = arith.constant dense<0.000000e+00> : vector<2x32xf32>
    %15 = tpu.matmul %13, %14, %cst_10 {dimension_numbers = #tpu.dot_dimension_numbers<[1], [0], [0], [1], [0, 0, 1, 1], [], []>} : vector<2x32xf32>, vector<32x32xf32>, vector<2x32xf32> -> vector<2x32xf32>
    %c0_11 = arith.constant 0 : index
    %c0_12 = arith.constant 0 : index
    %16 = vector.load %arg5[%c0_11, %c0_12] : memref<1x32xf32, #tpu.memory_space<vmem>>, vector<1x32xf32>
    %17 = vector.broadcast %16 : vector<1x32xf32> to vector<2x32xf32>
    %18 = arith.addf %15, %17 : vector<2x32xf32>
    %c0_13 = arith.constant 0 : index
    %c0_14 = arith.constant 0 : index
    %19 = vector.load %arg6[%c0_13, %c0_14] : memref<32x32xf32, #tpu.memory_space<vmem>>, vector<32x32xf32>
    %cst_15 = arith.constant dense<0.000000e+00> : vector<2x32xf32>
    %20 = tpu.matmul %18, %19, %cst_15 {dimension_numbers = #tpu.dot_dimension_numbers<[1], [0], [0], [1], [0, 0, 1, 1], [], []>} : vector<2x32xf32>, vector<32x32xf32>, vector<2x32xf32> -> vector<2x32xf32>
    %c0_16 = arith.constant 0 : index
    %c0_17 = arith.constant 0 : index
    %21 = vector.load %arg7[%c0_16, %c0_17] : memref<1x32xf32, #tpu.memory_space<vmem>>, vector<1x32xf32>
    %22 = vector.broadcast %21 : vector<1x32xf32> to vector<2x32xf32>
    %23 = arith.addf %20, %22 : vector<2x32xf32>
    %cst_18 = arith.constant 5.000000e-01 : f32
    %24 = vector.broadcast %cst_18 : f32 to vector<2x32xf32>
    %25 = arith.mulf %24, %23 : vector<2x32xf32>
    %cst_19 = arith.constant 0.707106769 : f32
    %26 = vector.broadcast %cst_19 : f32 to vector<2x32xf32>
    %27 = arith.mulf %23, %26 : vector<2x32xf32>
    %28 = math.erf %27 : vector<2x32xf32>
    %cst_20 = arith.constant 1.000000e+00 : f32
    %29 = vector.broadcast %cst_20 : f32 to vector<2x32xf32>
    %30 = arith.addf %29, %28 : vector<2x32xf32>
    %31 = arith.mulf %25, %30 : vector<2x32xf32>
    %c0_21 = arith.constant 0 : index
    %c0_22 = arith.constant 0 : index
    %32 = vector.load %arg8[%c0_21, %c0_22] : memref<32x32xf32, #tpu.memory_space<vmem>>, vector<32x32xf32>
    %cst_23 = arith.constant dense<0.000000e+00> : vector<2x32xf32>
    %33 = tpu.matmul %31, %32, %cst_23 {dimension_numbers = #tpu.dot_dimension_numbers<[1], [0], [0], [1], [0, 0, 1, 1], [], []>} : vector<2x32xf32>, vector<32x32xf32>, vector<2x32xf32> -> vector<2x32xf32>
    %c0_24 = arith.constant 0 : index
    %c0_25 = arith.constant 0 : index
    %34 = vector.load %arg9[%c0_24, %c0_25] : memref<1x32xf32, #tpu.memory_space<vmem>>, vector<1x32xf32>
    %35 = vector.broadcast %34 : vector<1x32xf32> to vector<2x32xf32>
    %36 = arith.addf %33, %35 : vector<2x32xf32>
    %37 = arith.addf %36, %18 : vector<2x32xf32>
    %c0_26 = arith.constant 0 : index
    %c0_27 = arith.constant 0 : index
    %38 = vector.load %arg10[%c0_26, %c0_27] : memref<32x32xf32, #tpu.memory_space<vmem>>, vector<32x32xf32>
    %cst_28 = arith.constant dense<0.000000e+00> : vector<2x32xf32>
    %39 = tpu.matmul %37, %38, %cst_28 {dimension_numbers = #tpu.dot_dimension_numbers<[1], [0], [0], [1], [0, 0, 1, 1], [], []>} : vector<2x32xf32>, vector<32x32xf32>, vector<2x32xf32> -> vector<2x32xf32>
    %c0_29 = arith.constant 0 : index
    %c0_30 = arith.constant 0 : index
    %40 = vector.load %arg11[%c0_29, %c0_30] : memref<1x32xf32, #tpu.memory_space<vmem>>, vector<1x32xf32>
    %41 = vector.broadcast %40 : vector<1x32xf32> to vector<2x32xf32>
    %42 = arith.addf %39, %41 : vector<2x32xf32>
    %cst_31 = arith.constant 5.000000e-01 : f32
    %43 = vector.broadcast %cst_31 : f32 to vector<2x32xf32>
    %44 = arith.mulf %43, %42 : vector<2x32xf32>
    %cst_32 = arith.constant 0.707106769 : f32
    %45 = vector.broadcast %cst_32 : f32 to vector<2x32xf32>
    %46 = arith.mulf %42, %45 : vector<2x32xf32>
    %47 = math.erf %46 : vector<2x32xf32>
    %cst_33 = arith.constant 1.000000e+00 : f32
    %48 = vector.broadcast %cst_33 : f32 to vector<2x32xf32>
    %49 = arith.addf %48, %47 : vector<2x32xf32>
    %50 = arith.mulf %44, %49 : vector<2x32xf32>
    %c0_34 = arith.constant 0 : index
    %c0_35 = arith.constant 0 : index
    %51 = vector.load %arg12[%c0_34, %c0_35] : memref<32x32xf32, #tpu.memory_space<vmem>>, vector<32x32xf32>
    %cst_36 = arith.constant dense<0.000000e+00> : vector<2x32xf32>
    %52 = tpu.matmul %50, %51, %cst_36 {dimension_numbers = #tpu.dot_dimension_numbers<[1], [0], [0], [1], [0, 0, 1, 1], [], []>} : vector<2x32xf32>, vector<32x32xf32>, vector<2x32xf32> -> vector<2x32xf32>
    %c0_37 = arith.constant 0 : index
    %c0_38 = arith.constant 0 : index
    %53 = vector.load %arg13[%c0_37, %c0_38] : memref<1x32xf32, #tpu.memory_space<vmem>>, vector<1x32xf32>
    %54 = vector.broadcast %53 : vector<1x32xf32> to vector<2x32xf32>
    %55 = arith.addf %52, %54 : vector<2x32xf32>
    %56 = arith.addf %55, %37 : vector<2x32xf32>
    %57 = vector.extract_strided_slice %56 {offsets = [0, 0], sizes = [2, 16], strides = [1, 1]} : vector<2x32xf32> to vector<2x16xf32>
    %58 = vector.extract_strided_slice %56 {offsets = [0, 16], sizes = [2, 16], strides = [1, 1]} : vector<2x32xf32> to vector<2x16xf32>
    %c0_39 = arith.constant 0 : index
    %c0_40 = arith.constant 0 : index
    %59 = vector.load %arg1[%c0_39, %c0_40] : memref<2x16xf32, #tpu.memory_space<vmem>>, vector<2x16xf32>
    %cst_41 = arith.constant 5.000000e-01 : f32
    %60 = vector.broadcast %cst_41 : f32 to vector<2x16xf32>
    %61 = arith.mulf %60, %58 : vector<2x16xf32>
    %62 = math.exp %61 : vector<2x16xf32>
    %63 = arith.mulf %62, %59 : vector<2x16xf32>
    %64 = arith.addf %57, %63 : vector<2x16xf32>
    %cst_42 = arith.constant 1.000000e+00 : f32
    %65 = vector.broadcast %cst_42 : f32 to vector<2x16xf32>
    %66 = arith.addf %65, %58 : vector<2x16xf32>
    %67 = math.exp %58 : vector<2x16xf32>
    %68 = arith.subf %66, %67 : vector<2x16xf32>
    %69 = arith.mulf %57, %57 : vector<2x16xf32>
    %70 = arith.subf %68, %69 : vector<2x16xf32>
    %cst_43 = arith.constant dense<0.000000e+00> : vector<2xf32>
    %71 = vector.multi_reduction <add>, %70, %cst_43 [1] : vector<2x16xf32> to vector<2xf32>
    %72 = vector.shape_cast %71 : vector<2xf32> to vector<2x1xf32>
    %cst_44 = arith.constant -5.000000e-01 : f32
    %73 = vector.broadcast %cst_44 : f32 to vector<2x1xf32>
    %74 = arith.mulf %73, %72 : vector<2x1xf32>
    %cst_45 = arith.constant dense<0.000000e+00> : vector<1xf32>
    %75 = vector.multi_reduction <add>, %74, %cst_45 [0] : vector<2x1xf32> to vector<1xf32>
    %76 = vector.shape_cast %75 : vector<1xf32> to vector<1x1xf32>
    %cst_46 = arith.constant 2.000000e+00 : f32
    %77 = vector.broadcast %cst_46 : f32 to vector<1x1xf32>
    %78 = arith.divf %76, %77 : vector<1x1xf32>
    %c0_47 = arith.constant 0 : index
    %c0_48 = arith.constant 0 : index
    %79 = vector.load %arg28[%c0_47, %c0_48] : memref<1x1xf32, #tpu.memory_space<vmem>>, vector<1x1xf32>
    tpu.vector_store %arg28[%c0_47, %c0_48], %78 {strides = array<i32>} : memref<1x1xf32, #tpu.memory_space<vmem>>, vector<1x1xf32>,
    %c0_49 = arith.constant 0 : index
    %c0_50 = arith.constant 0 : index
    %80 = vector.load %arg14[%c0_49, %c0_50] : memref<16x32xf32, #tpu.memory_space<vmem>>, vector<16x32xf32>
    %cst_51 = arith.constant dense<0.000000e+00> : vector<2x32xf32>
    %81 = tpu.matmul %64, %80, %cst_51 {dimension_numbers = #tpu.dot_dimension_numbers<[1], [0], [0], [1], [0, 0, 1, 1], [], []>} : vector<2x16xf32>, vector<16x32xf32>, vector<2x32xf32> -> vector<2x32xf32>
    %c0_52 = arith.constant 0 : index
    %c0_53 = arith.constant 0 : index
    %82 = vector.load %arg15[%c0_52, %c0_53] : memref<1x32xf32, #tpu.memory_space<vmem>>, vector<1x32xf32>
    %83 = vector.broadcast %82 : vector<1x32xf32> to vector<2x32xf32>
    %84 = arith.addf %81, %83 : vector<2x32xf32>
    %cst_54 = arith.constant 5.000000e-01 : f32
    %85 = vector.broadcast %cst_54 : f32 to vector<2x32xf32>
    %86 = arith.mulf %85, %84 : vector<2x32xf32>
    %cst_55 = arith.constant 0.707106769 : f32
    %87 = vector.broadcast %cst_55 : f32 to vector<2x32xf32>
    %88 = arith.mulf %84, %87 : vector<2x32xf32>
    %89 = math.erf %88 : vector<2x32xf32>
    %cst_56 = arith.constant 1.000000e+00 : f32
    %90 = vector.broadcast %cst_56 : f32 to vector<2x32xf32>
    %91 = arith.addf %90, %89 : vector<2x32xf32>
    %92 = arith.mulf %86, %91 : vector<2x32xf32>
    %c0_57 = arith.constant 0 : index
    %c0_58 = arith.constant 0 : index
    %93 = vector.load %arg16[%c0_57, %c0_58] : memref<32x32xf32, #tpu.memory_space<vmem>>, vector<32x32xf32>
    %cst_59 = arith.constant dense<0.000000e+00> : vector<2x32xf32>
    %94 = tpu.matmul %92, %93, %cst_59 {dimension_numbers = #tpu.dot_dimension_numbers<[1], [0], [0], [1], [0, 0, 1, 1], [], []>} : vector<2x32xf32>, vector<32x32xf32>, vector<2x32xf32> -> vector<2x32xf32>
    %c0_60 = arith.constant 0 : index
    %c0_61 = arith.constant 0 : index
    %95 = vector.load %arg17[%c0_60, %c0_61] : memref<1x32xf32, #tpu.memory_space<vmem>>, vector<1x32xf32>
    %96 = vector.broadcast %95 : vector<1x32xf32> to vector<2x32xf32>
    %97 = arith.addf %94, %96 : vector<2x32xf32>
    %c0_62 = arith.constant 0 : index
    %c0_63 = arith.constant 0 : index
    %98 = vector.load %arg18[%c0_62, %c0_63] : memref<32x32xf32, #tpu.memory_space<vmem>>, vector<32x32xf32>
    %cst_64 = arith.constant dense<0.000000e+00> : vector<2x32xf32>
    %99 = tpu.matmul %97, %98, %cst_64 {dimension_numbers = #tpu.dot_dimension_numbers<[1], [0], [0], [1], [0, 0, 1, 1], [], []>} : vector<2x32xf32>, vector<32x32xf32>, vector<2x32xf32> -> vector<2x32xf32>
    %c0_65 = arith.constant 0 : index
    %c0_66 = arith.constant 0 : index
    %100 = vector.load %arg19[%c0_65, %c0_66] : memref<1x32xf32, #tpu.memory_space<vmem>>, vector<1x32xf32>
    %101 = vector.broadcast %100 : vector<1x32xf32> to vector<2x32xf32>
    %102 = arith.addf %99, %101 : vector<2x32xf32>
    %cst_67 = arith.constant 5.000000e-01 : f32
    %103 = vector.broadcast %cst_67 : f32 to vector<2x32xf32>
    %104 = arith.mulf %103, %102 : vector<2x32xf32>
    %cst_68 = arith.constant 0.707106769 : f32
    %105 = vector.broadcast %cst_68 : f32 to vector<2x32xf32>
    %106 = arith.mulf %102, %105 : vector<2x32xf32>
    %107 = math.erf %106 : vector<2x32xf32>
    %cst_69 = arith.constant 1.000000e+00 : f32
    %108 = vector.broadcast %cst_69 : f32 to vector<2x32xf32>
    %109 = arith.addf %108, %107 : vector<2x32xf32>
    %110 = arith.mulf %104, %109 : vector<2x32xf32>
    %c0_70 = arith.constant 0 : index
    %c0_71 = arith.constant 0 : index
    %111 = vector.load %arg20[%c0_70, %c0_71] : memref<32x32xf32, #tpu.memory_space<vmem>>, vector<32x32xf32>
    %cst_72 = arith.constant dense<0.000000e+00> : vector<2x32xf32>
    %112 = tpu.matmul %110, %111, %cst_72 {dimension_numbers = #tpu.dot_dimension_numbers<[1], [0], [0], [1], [0, 0, 1, 1], [], []>} : vector<2x32xf32>, vector<32x32xf32>, vector<2x32xf32> -> vector<2x32xf32>
    %c0_73 = arith.constant 0 : index
    %c0_74 = arith.constant 0 : index
    %113 = vector.load %arg21[%c0_73, %c0_74] : memref<1x32xf32, #tpu.memory_space<vmem>>, vector<1x32xf32>
    %114 = vector.broadcast %113 : vector<1x32xf32> to vector<2x32xf32>
    %115 = arith.addf %112, %114 : vector<2x32xf32>
    %116 = arith.addf %115, %97 : vector<2x32xf32>
    %c0_75 = arith.constant 0 : index
    %c0_76 = arith.constant 0 : index
    %117 = vector.load %arg22[%c0_75, %c0_76] : memref<32x256xf32, #tpu.memory_space<vmem>>, vector<32x256xf32>
    %cst_77 = arith.constant dense<0.000000e+00> : vector<2x256xf32>
    %118 = tpu.matmul %116, %117, %cst_77 {dimension_numbers = #tpu.dot_dimension_numbers<[1], [0], [0], [1], [0, 0, 1, 1], [], []>} : vector<2x32xf32>, vector<32x256xf32>, vector<2x256xf32> -> vector<2x256xf32>
    %c0_78 = arith.constant 0 : index
    %c0_79 = arith.constant 0 : index
    %119 = vector.load %arg23[%c0_78, %c0_79] : memref<1x256xf32, #tpu.memory_space<vmem>>, vector<1x256xf32>
    %120 = vector.broadcast %119 : vector<1x256xf32> to vector<2x256xf32>
    %121 = arith.addf %118, %120 : vector<2x256xf32>
    %cst_80 = arith.constant 5.000000e-01 : f32
    %122 = vector.broadcast %cst_80 : f32 to vector<2x256xf32>
    %123 = arith.mulf %122, %121 : vector<2x256xf32>
    %cst_81 = arith.constant 0.707106769 : f32
    %124 = vector.broadcast %cst_81 : f32 to vector<2x256xf32>
    %125 = arith.mulf %121, %124 : vector<2x256xf32>
    %126 = math.erf %125 : vector<2x256xf32>
    %cst_82 = arith.constant 1.000000e+00 : f32
    %127 = vector.broadcast %cst_82 : f32 to vector<2x256xf32>
    %128 = arith.addf %127, %126 : vector<2x256xf32>
    %129 = arith.mulf %123, %128 : vector<2x256xf32>
    %c0_83 = arith.constant 0 : index
    %c0_84 = arith.constant 0 : index
    %130 = vector.load %arg24[%c0_83, %c0_84] : memref<256x256xf32, #tpu.memory_space<vmem>>, vector<256x256xf32>
    %cst_85 = arith.constant dense<0.000000e+00> : vector<2x256xf32>
    %131 = tpu.matmul %129, %130, %cst_85 {dimension_numbers = #tpu.dot_dimension_numbers<[1], [0], [0], [1], [0, 0, 1, 1], [], []>} : vector<2x256xf32>, vector<256x256xf32>, vector<2x256xf32> -> vector<2x256xf32>
    %c0_86 = arith.constant 0 : index
    %c0_87 = arith.constant 0 : index
    %132 = vector.load %arg25[%c0_86, %c0_87] : memref<1x256xf32, #tpu.memory_space<vmem>>, vector<1x256xf32>
    %133 = vector.broadcast %132 : vector<1x256xf32> to vector<2x256xf32>
    %134 = arith.addf %131, %133 : vector<2x256xf32>
    %c0_88 = arith.constant 0 : index
    %c0_89 = arith.constant 0 : index
    %135 = vector.load %arg26[%c0_88, %c0_89] : memref<2x256xf32, #tpu.memory_space<vmem>>, vector<2x256xf32>
    tpu.vector_store %arg26[%c0_88, %c0_89], %134 {strides = array<i32>} : memref<2x256xf32, #tpu.memory_space<vmem>>, vector<2x256xf32>,
    %cst_90 = arith.constant 0.000000e+00 : f32
    %136 = vector.broadcast %cst_90 : f32 to vector<2x256xf32>
    %137 = arith.cmpf ogt, %134, %136 : vector<2x256xf32>
    %138 = arith.extui %137 : vector<2x256xi1> to vector<2x256xi32>
    %139 = arith.sitofp %138 : vector<2x256xi32> to vector<2x256xf32>
    %c0_91 = arith.constant 0 : index
    %c0_92 = arith.constant 0 : index
    %140 = vector.load %arg27[%c0_91, %c0_92] : memref<2x256xf32, #tpu.memory_space<vmem>>, vector<2x256xf32>
    tpu.vector_store %arg27[%c0_91, %c0_92], %139 {strides = array<i32>} : memref<2x256xf32, #tpu.memory_space<vmem>>, vector<2x256xf32>,
    return
  }
}

</mosaic_0001>

<llo_original>
// kernel: tpu_custom_call.1
$region0: #{tpu_custom_call.1}
  #allocation0 [shape = 'u32[]', space=smem, size = 0x4, offset = 0x4, fixed_abs, tag = 'smem constant byte address 0x4 - core index']
  #allocation1 [shape = 'u32[144,128]{1,0:T(1,128)}', space=vmem, size = 0x12000, scoped, tag = 'internal scratch']
  %s0 = inlined_call_operand.hbm [shape: f32[2,256], index: 0, kind: input, shape index: {}]
  %s1 = inlined_call_operand.vmem [shape: f32[2,16], index: 1, kind: input, shape index: {}]
  %s2 = inlined_call_operand.vmem [shape: f32[256,32], index: 2, kind: input, shape index: {}]
  %s3 = inlined_call_operand.hbm [shape: f32[1,32], index: 3, kind: input, shape index: {}]
  %s4 = inlined_call_operand.vmem [shape: f32[32,32], index: 4, kind: input, shape index: {}]
  %s5 = inlined_call_operand.hbm [shape: f32[1,32], index: 5, kind: input, shape index: {}]
  %s6 = inlined_call_operand.vmem [shape: f32[32,32], index: 6, kind: input, shape index: {}]
  %s7 = inlined_call_operand.vmem [shape: f32[1,32], index: 7, kind: input, shape index: {}]
  %s8 = inlined_call_operand.vmem [shape: f32[32,32], index: 8, kind: input, shape index: {}]
  %s9 = inlined_call_operand.vmem [shape: f32[1,32], index: 9, kind: input, shape index: {}]
  %s10 = inlined_call_operand.vmem [shape: f32[32,32], index: 10, kind: input, shape index: {}]
  %s11 = inlined_call_operand.vmem [shape: f32[1,32], index: 11, kind: input, shape index: {}]
  %s12 = inlined_call_operand.vmem [shape: f32[32,32], index: 12, kind: input, shape index: {}]
  %s13 = inlined_call_operand.vmem [shape: f32[1,32], index: 13, kind: input, shape index: {}]
  %s14 = inlined_call_operand.vmem [shape: f32[16,32], index: 14, kind: input, shape index: {}]
  %s15 = inlined_call_operand.vmem [shape: f32[1,32], index: 15, kind: input, shape index: {}]
  %s16 = inlined_call_operand.vmem [shape: f32[32,32], index: 16, kind: input, shape index: {}]
  %s17 = inlined_call_operand.vmem [shape: f32[1,32], index: 17, kind: input, shape index: {}]
  %s18 = inlined_call_operand.vmem [shape: f32[32,32], index: 18, kind: input, shape index: {}]
  %s19 = inlined_call_operand.vmem [shape: f32[1,32], index: 19, kind: input, shape index: {}]
  %s20 = inlined_call_operand.vmem [shape: f32[32,32], index: 20, kind: input, shape index: {}]
  %s21 = inlined_call_operand.vmem [shape: f32[1,32], index: 21, kind: input, shape index: {}]
  %s22 = inlined_call_operand.vmem [shape: f32[32,256], index: 22, kind: input, shape index: {}]
  %s23 = inlined_call_operand.vmem [shape: f32[1,256], index: 23, kind: input, shape index: {}]
  %s24 = inlined_call_operand.hbm [shape: f32[256,256], index: 24, kind: input, shape index: {}]
  %s25 = inlined_call_operand.vmem [shape: f32[1,256], index: 25, kind: input, shape index: {}]
  %s26 = inlined_call_operand.hbm [shape: f32[2,256], index: 26, kind: output, shape index: {0}]
  %s27 = inlined_call_operand.hbm [shape: f32[2,256], index: 27, kind: output, shape index: {1}]
  %s28 = inlined_call_operand.hbm [shape: f32[1,1], index: 28, kind: output, shape index: {2}]
  %29 = xla_tuple %s26, %s27, %s28
  %s30 = sld [smem:[#allocation0]]
  $region146: #{tpu_custom_call.1} parent=0
    _
  %s32 = ssub.s32 1, %s30
  %s33 = scalar_select 0, %s32, %s30
  $region1: #{tpu_custom_call.1} parent=0
    #allocation2 [shape = 'u8[2048]{0}', space=vmem, size = 0x800, scoped, tag = 'input window, operand 0, single buffered']
    #allocation3 [shape = 's32[1]{0}', space=sflag, size = 0x4, scoped, tag = 'scoped memory for tpu_custom_call.1']
    #allocation4 [shape = 's32[1]{0}', space=sflag, size = 0x4, scoped, tag = 'scoped memory for tpu_custom_call.1']
    #allocation5 [shape = 'u8[512]{0}', space=vmem, size = 0x400, scoped, tag = 'input window, operand 3, single buffered']
    #allocation6 [shape = 's32[1]{0}', space=sflag, size = 0x4, scoped, tag = 'scoped memory for tpu_custom_call.1']
    #allocation7 [shape = 'u8[512]{0}', space=vmem, size = 0x400, scoped, tag = 'input window, operand 5, single buffered']
    #allocation8 [shape = 'u8[262144]{0}', space=vmem, size = 0x40000, scoped, tag = 'input window, operand 24, single buffered']
    #allocation9 [shape = 's32[1]{0}', space=sflag, size = 0x4, scoped, tag = 'scoped memory for tpu_custom_call.1']
    #allocation10 [shape = 'u8[2048]{0}', space=vmem, size = 0x800, scoped, tag = 'output window, operand 0, single buffered']
    #allocation11 [shape = 'u8[2048]{0}', space=vmem, size = 0x800, scoped, tag = 'output window, operand 1, single buffered']
    #allocation12 [shape = 's32[1]{0}', space=sflag, size = 0x4, scoped, tag = 'scoped memory for tpu_custom_call.1']
    #allocation13 [shape = 'u8[512]{0}', space=vmem, size = 0x400, scoped, tag = 'output window, operand 2, single buffered']
    %34 = vsyncpa [#allocation3], 0
    %35 = vsyncpa [#allocation6], 0
    %36 = vsyncpa [#allocation9], 0
    %37 = vsyncpa [#allocation4], 0
    %38 = vsyncpa [#allocation12], 0
    // Predicated region
    $region2: #{tpu_custom_call.1} parent=1 // pred_check
      _
    $region3: #{tpu_custom_call.1} parent=1 // pred_check_branch
      %40 = sbr.rel (0) target = $region5
    $region4: #{tpu_custom_call.1} parent=1 // pred_region
      %s42 = ssub.s32 64, 64
      %43 = vsyncadd [#allocation3], %s42
      %s45 = sshll.u32 [#allocation2], 4
      %s46 = int_to_ptr.vmem [resolvable:$true] %s45
      %48 = dma.hbm_to_vmem [thread:$0]  %s0, 64, %s46, [#allocation3]
    $region5: #{tpu_custom_call.1} parent=1 // pred_fallthru
      _
    // Predicated region
    $region6: #{tpu_custom_call.1} parent=1 // pred_check
      _
    $region7: #{tpu_custom_call.1} parent=1 // pred_check_branch
      %50 = sbr.rel (0) target = $region9
    $region8: #{tpu_custom_call.1} parent=1 // pred_region
      _
    $region9: #{tpu_custom_call.1} parent=1 // pred_fallthru
      _
    // Predicated region
    $region10: #{tpu_custom_call.1} parent=1 // pred_check
      _
    $region11: #{tpu_custom_call.1} parent=1 // pred_check_branch
      %52 = sbr.rel (0) target = $region13
    $region12: #{tpu_custom_call.1} parent=1 // pred_region
      _
    $region13: #{tpu_custom_call.1} parent=1 // pred_fallthru
      _
    // Predicated region
    $region14: #{tpu_custom_call.1} parent=1 // pred_check
      _
    $region15: #{tpu_custom_call.1} parent=1 // pred_check_branch
      %54 = sbr.rel (0) target = $region17
    $region16: #{tpu_custom_call.1} parent=1 // pred_region
      %s56 = ssub.s32 16, 16
      %57 = vsyncadd [#allocation6], %s56
      %s59 = sshll.u32 [#allocation5], 4
      %s60 = int_to_ptr.vmem [resolvable:$true] %s59
      %62 = dma.hbm_to_vmem [thread:$0]  %s3, 16, %s60, [#allocation6]
    $region17: #{tpu_custom_call.1} parent=1 // pred_fallthru
      _
    // Predicated region
    $region18: #{tpu_custom_call.1} parent=1 // pred_check
      _
    $region19: #{tpu_custom_call.1} parent=1 // pred_check_branch
      %64 = sbr.rel (0) target = $region21
    $region20: #{tpu_custom_call.1} parent=1 // pred_region
      _
    $region21: #{tpu_custom_call.1} parent=1 // pred_fallthru
      _
    // Predicated region
    $region22: #{tpu_custom_call.1} parent=1 // pred_check
      _
    $region23: #{tpu_custom_call.1} parent=1 // pred_check_branch
      %66 = sbr.rel (0) target = $region25
    $region24: #{tpu_custom_call.1} parent=1 // pred_region
      %s68 = ssub.s32 16, 16
      %69 = vsyncadd [#allocation6], %s68
      %s71 = sshll.u32 [#allocation7], 4
      %s72 = int_to_ptr.vmem [resolvable:$true] %s71
      %74 = dma.hbm_to_vmem [thread:$0]  %s5, 16, %s72, [#allocation6]
    $region25: #{tpu_custom_call.1} parent=1 // pred_fallthru
      _
    // Predicated region
    $region26: #{tpu_custom_call.1} parent=1 // pred_check
      _
    $region27: #{tpu_custom_call.1} parent=1 // pred_check_branch
      %76 = sbr.rel (0) target = $region29
    $region28: #{tpu_custom_call.1} parent=1 // pred_region
      _
    $region29: #{tpu_custom_call.1} parent=1 // pred_fallthru
      _
    // Predicated region
    $region30: #{tpu_custom_call.1} parent=1 // pred_check
      _
    $region31: #{tpu_custom_call.1} parent=1 // pred_check_branch
      %78 = sbr.rel (0) target = $region33
    $region32: #{tpu_custom_call.1} parent=1 // pred_region
      _
    $region33: #{tpu_custom_call.1} parent=1 // pred_fallthru
      _
    // Predicated region
    $region34: #{tpu_custom_call.1} parent=1 // pred_check
      _
    $region35: #{tpu_custom_call.1} parent=1 // pred_check_branch
      %80 = sbr.rel (0) target = $region37
    $region36: #{tpu_custom_call.1} parent=1 // pred_region
      _
    $region37: #{tpu_custom_call.1} parent=1 // pred_fallthru
      _
    // Predicated region
    $region38: #{tpu_custom_call.1} parent=1 // pred_check
      _
    $region39: #{tpu_custom_call.1} parent=1 // pred_check_branch
      %82 = sbr.rel (0) target = $region41
    $region40: #{tpu_custom_call.1} parent=1 // pred_region
      _
    $region41: #{tpu_custom_call.1} parent=1 // pred_fallthru
      _
    // Predicated region
    $region42: #{tpu_custom_call.1} parent=1 // pred_check
      _
    $region43: #{tpu_custom_call.1} parent=1 // pred_check_branch
      %84 = sbr.rel (0) target = $region45
    $region44: #{tpu_custom_call.1} parent=1 // pred_region
      _
    $region45: #{tpu_custom_call.1} parent=1 // pred_fallthru
      _
    // Predicated region
    $region46: #{tpu_custom_call.1} parent=1 // pred_check
      _
    $region47: #{tpu_custom_call.1} parent=1 // pred_check_branch
      %86 = sbr.rel (0) target = $region49
    $region48: #{tpu_custom_call.1} parent=1 // pred_region
      _
    $region49: #{tpu_custom_call.1} parent=1 // pred_fallthru
      _
    // Predicated region
    $region50: #{tpu_custom_call.1} parent=1 // pred_check
      _
    $region51: #{tpu_custom_call.1} parent=1 // pred_check_branch
      %88 = sbr.rel (0) target = $region53
    $region52: #{tpu_custom_call.1} parent=1 // pred_region
      _
    $region53: #{tpu_custom_call.1} parent=1 // pred_fallthru
      _
    // Predicated region
    $region54: #{tpu_custom_call.1} parent=1 // pred_check
      _
    $region55: #{tpu_custom_call.1} parent=1 // pred_check_branch
      %90 = sbr.rel (0) target = $region57
    $region56: #{tpu_custom_call.1} parent=1 // pred_region
      _
    $region57: #{tpu_custom_call.1} parent=1 // pred_fallthru
      _
    // Predicated region
    $region58: #{tpu_custom_call.1} parent=1 // pred_check
      _
    $region59: #{tpu_custom_call.1} parent=1 // pred_check_branch
      %92 = sbr.rel (0) target = $region61
    $region60: #{tpu_custom_call.1} parent=1 // pred_region
      _
    $region61: #{tpu_custom_call.1} parent=1 // pred_fallthru
      _
    // Predicated region
    $region62: #{tpu_custom_call.1} parent=1 // pred_check
      _
    $region63: #{tpu_custom_call.1} parent=1 // pred_check_branch
      %94 = sbr.rel (0) target = $region65
    $region64: #{tpu_custom_call.1} parent=1 // pred_region
      _
    $region65: #{tpu_custom_call.1} parent=1 // pred_fallthru
      _
    // Predicated region
    $region66: #{tpu_custom_call.1} parent=1 // pred_check
      _
    $region67: #{tpu_custom_call.1} parent=1 // pred_check_branch
      %96 = sbr.rel (0) target = $region69
    $region68: #{tpu_custom_call.1} parent=1 // pred_region
      _
    $region69: #{tpu_custom_call.1} parent=1 // pred_fallthru
      _
    // Predicated region
    $region70: #{tpu_custom_call.1} parent=1 // pred_check
      _
    $region71: #{tpu_custom_call.1} parent=1 // pred_check_branch
      %98 = sbr.rel (0) target = $region73
    $region72: #{tpu_custom_call.1} parent=1 // pred_region
      _
    $region73: #{tpu_custom_call.1} parent=1 // pred_fallthru
      _
    // Predicated region
    $region74: #{tpu_custom_call.1} parent=1 // pred_check
      _
    $region75: #{tpu_custom_call.1} parent=1 // pred_check_branch
      %100 = sbr.rel (0) target = $region77
    $region76: #{tpu_custom_call.1} parent=1 // pred_region
      _
    $region77: #{tpu_custom_call.1} parent=1 // pred_fallthru
      _
    // Predicated region
    $region78: #{tpu_custom_call.1} parent=1 // pred_check
      _
    $region79: #{tpu_custom_call.1} parent=1 // pred_check_branch
      %102 = sbr.rel (0) target = $region81
    $region80: #{tpu_custom_call.1} parent=1 // pred_region
      _
    $region81: #{tpu_custom_call.1} parent=1 // pred_fallthru
      _
    // Predicated region
    $region82: #{tpu_custom_call.1} parent=1 // pred_check
      _
    $region83: #{tpu_custom_call.1} parent=1 // pred_check_branch
      %104 = sbr.rel (0) target = $region85
    $region84: #{tpu_custom_call.1} parent=1 // pred_region
      _
    $region85: #{tpu_custom_call.1} parent=1 // pred_fallthru
      _
    // Predicated region
    $region86: #{tpu_custom_call.1} parent=1 // pred_check
      _
    $region87: #{tpu_custom_call.1} parent=1 // pred_check_branch
      %106 = sbr.rel (0) target = $region89
    $region88: #{tpu_custom_call.1} parent=1 // pred_region
      _
    $region89: #{tpu_custom_call.1} parent=1 // pred_fallthru
      _
    // Predicated region
    $region90: #{tpu_custom_call.1} parent=1 // pred_check
      _
    $region91: #{tpu_custom_call.1} parent=1 // pred_check_branch
      %108 = sbr.rel (0) target = $region93
    $region92: #{tpu_custom_call.1} parent=1 // pred_region
      _
    $region93: #{tpu_custom_call.1} parent=1 // pred_fallthru
      _
    // Predicated region
    $region94: #{tpu_custom_call.1} parent=1 // pred_check
      _
    $region95: #{tpu_custom_call.1} parent=1 // pred_check_branch
      %110 = sbr.rel (0) target = $region97
    $region96: #{tpu_custom_call.1} parent=1 // pred_region
      _
    $region97: #{tpu_custom_call.1} parent=1 // pred_fallthru
      _
    // Predicated region
    $region98: #{tpu_custom_call.1} parent=1 // pred_check
      _
    $region99: #{tpu_custom_call.1} parent=1 // pred_check_branch
      %112 = sbr.rel (0) target = $region101
    $region100: #{tpu_custom_call.1} parent=1 // pred_region
      %s114 = ssub.s32 8192, 8192
      %115 = vsyncadd [#allocation9], %s114
      %s116 = sshll.u32 [#allocation8], 4
      %s117 = int_to_ptr.vmem [resolvable:$true] %s116
      %122 = dma.hbm_to_vmem [thread:$0]  %s24, 8192, %s117, [#allocation9], 256, 256, 16
    $region101: #{tpu_custom_call.1} parent=1 // pred_fallthru
      _
    // Predicated region
    $region102: #{tpu_custom_call.1} parent=1 // pred_check
      _
    $region103: #{tpu_custom_call.1} parent=1 // pred_check_branch
      %124 = sbr.rel (0) target = $region105
    $region104: #{tpu_custom_call.1} parent=1 // pred_region
      _
    $region105: #{tpu_custom_call.1} parent=1 // pred_fallthru
      _
    // Predicated region
    $region106: #{tpu_custom_call.1} parent=1 // pred_check
      _
    $region107: #{tpu_custom_call.1} parent=1 // pred_check_branch
      %126 = sbr.rel (0) target = $region109
    $region108: #{tpu_custom_call.1} parent=1 // pred_region
      %127 = dma.done [#allocation3], 64
    $region109: #{tpu_custom_call.1} parent=1 // pred_fallthru
      _
    // Predicated region
    $region110: #{tpu_custom_call.1} parent=1 // pred_check
      _
    $region111: #{tpu_custom_call.1} parent=1 // pred_check_branch
      %129 = sbr.rel (0) target = $region113
    $region112: #{tpu_custom_call.1} parent=1 // pred_region
      %130 = dma.done [#allocation6], 16
    $region113: #{tpu_custom_call.1} parent=1 // pred_fallthru
      _
    // Predicated region
    $region114: #{tpu_custom_call.1} parent=1 // pred_check
      _
    $region115: #{tpu_custom_call.1} parent=1 // pred_check_branch
      %132 = sbr.rel (0) target = $region117
    $region116: #{tpu_custom_call.1} parent=1 // pred_region
      %133 = dma.done [#allocation6], 16
    $region117: #{tpu_custom_call.1} parent=1 // pred_fallthru
      _
    // Predicated region
    $region118: #{tpu_custom_call.1} parent=1 // pred_check
      _
    $region119: #{tpu_custom_call.1} parent=1 // pred_check_branch
      %135 = sbr.rel (0) target = $region121
    $region120: #{tpu_custom_call.1} parent=1 // pred_region
      %136 = dma.done [#allocation9], 8192
    $region121: #{tpu_custom_call.1} parent=1 // pred_fallthru
      _
    %v137 = vld [vmem:[#allocation2] sm:$0xf]
    %v138 = vld [vmem:[%s2] sm:$0xff]
    %v139 = vld [vmem:[%s2 + $0x8] sm:$0xff]
    %v140 = vld [vmem:[%s2 + $0x10] sm:$0xff]
    %v141 = vld [vmem:[%s2 + $0x18] sm:$0xff]
    %v142 = vld [vmem:[%s2 + $0x20] sm:$0xff]
    %v143 = vld [vmem:[%s2 + $0x28] sm:$0xff]
    %v144 = vld [vmem:[%s2 + $0x30] sm:$0xff]
    %v145 = vld [vmem:[%s2 + $0x38] sm:$0xff]
    %v146 = vld [vmem:[%s2 + $0x40] sm:$0xff]
    %v147 = vld [vmem:[%s2 + $0x48] sm:$0xff]
    %v148 = vld [vmem:[%s2 + $0x50] sm:$0xff]
    %v149 = vld [vmem:[%s2 + $0x58] sm:$0xff]
    %v150 = vld [vmem:[%s2 + $0x60] sm:$0xff]
    %v151 = vld [vmem:[%s2 + $0x68] sm:$0xff]
    %v152 = vld [vmem:[%s2 + $0x70] sm:$0xff]
    %v153 = vld [vmem:[%s2 + $0x78] sm:$0xff]
    %v154 = vld [vmem:[%s2 + $0x80] sm:$0xff]
    %v155 = vld [vmem:[%s2 + $0x88] sm:$0xff]
    %v156 = vld [vmem:[%s2 + $0x90] sm:$0xff]
    %v157 = vld [vmem:[%s2 + $0x98] sm:$0xff]
    %v158 = vld [vmem:[%s2 + $0xa0] sm:$0xff]
    %v159 = vld [vmem:[%s2 + $0xa8] sm:$0xff]
    %v160 = vld [vmem:[%s2 + $0xb0] sm:$0xff]
    %v161 = vld [vmem:[%s2 + $0xb8] sm:$0xff]
    %v162 = vld [vmem:[%s2 + $0xc0] sm:$0xff]
    %v163 = vld [vmem:[%s2 + $0xc8] sm:$0xff]
    %v164 = vld [vmem:[%s2 + $0xd0] sm:$0xff]
    %v165 = vld [vmem:[%s2 + $0xd8] sm:$0xff]
    %v166 = vld [vmem:[%s2 + $0xe0] sm:$0xff]
    %v167 = vld [vmem:[%s2 + $0xe8] sm:$0xff]
    %v168 = vld [vmem:[%s2 + $0xf0] sm:$0xff]
    %v169 = vld [vmem:[%s2 + $0xf8] sm:$0xff]
    %v170 = vld [vmem:[#allocation5] sm:$0x1]
    %v172 = vlaneseq
    %v173 = vshrl.u32 %v172, 7
    %v174 = vsub.s32 0, %v173
    %v175 = vrot.slane %v170, %v174
    %v179 = vunpack.c.l.s4 1983009808
    %v180 = vunpack.c.0.s8 %v179
    %v181 = vlaneseq
    %v182 = vshrl.u32 %v181, 7
    %v183 = vsub.s32 %v180, %v182
    %v184 = vrot.slane %v137, %v183
    %v185 = vcombine.high %v184, %v184
    %188 = vmatprep.subr.mxu0 0.0
    %189 = vmatpush1.msra.mxu0 %v138
    %190 = vmatprep.subr.mxu0 0.0
    %191 = vmatpush1.msra.mxu0 %v139
    %192 = vmatprep.subr.mxu0 0.0
    %193 = vmatpush1.msra.mxu0 %v140
    %194 = vmatprep.subr.mxu0 0.0
    %195 = vmatpush1.msra.mxu0 %v141
    %196 = vmatprep.subr.mxu0 0.0
    %197 = vmatpush1.msra.mxu0 %v142
    %198 = vmatprep.subr.mxu0 0.0
    %199 = vmatpush1.msra.mxu0 %v143
    %200 = vmatprep.subr.mxu0 0.0
    %201 = vmatpush1.msra.mxu0 %v144
    %202 = vmatprep.subr.mxu0 0.0
    %203 = vmatpush1.msra.mxu0 %v145
    %204 = vmatprep.subr.mxu0 0.0
    %205 = vmatpush1.msra.mxu0 %v146
    %206 = vmatprep.subr.mxu0 0.0
    %207 = vmatpush1.msra.mxu0 %v147
    %208 = vmatprep.subr.mxu0 0.0
    %209 = vmatpush1.msra.mxu0 %v148
    %210 = vmatprep.subr.mxu0 0.0
    %211 = vmatpush1.msra.mxu0 %v149
    %212 = vmatprep.subr.mxu0 0.0
    %213 = vmatpush1.msra.mxu0 %v150
    %214 = vmatprep.subr.mxu0 0.0
    %215 = vmatpush1.msra.mxu0 %v151
    %216 = vmatprep.subr.mxu0 0.0
    %217 = vmatpush1.msra.mxu0 %v152
    %218 = vmatprep.subr.mxu0 0.0
    %219 = vmatpush1.msra.mxu0 %v153
    %220 = vmatprep.subr.mxu0 0.0
    %221 = vmatpush1.msra.mxu0 %v154
    %222 = vmatprep.subr.mxu0 0.0
    %223 = vmatpush1.msra.mxu0 %v155
    %224 = vmatprep.subr.mxu0 0.0
    %225 = vmatpush1.msra.mxu0 %v156
    %226 = vmatprep.subr.mxu0 0.0
    %227 = vmatpush1.msra.mxu0 %v157
    %228 = vmatprep.subr.mxu0 0.0
    %229 = vmatpush1.msra.mxu0 %v158
    %230 = vmatprep.subr.mxu0 0.0
    %231 = vmatpush1.msra.mxu0 %v159
    %232 = vmatprep.subr.mxu0 0.0
    %233 = vmatpush1.msra.mxu0 %v160
    %234 = vmatprep.subr.mxu0 0.0
    %235 = vmatpush1.msra.mxu0 %v161
    %236 = vmatprep.subr.mxu0 0.0
    %237 = vmatpush1.msra.mxu0 %v162
    %238 = vmatprep.subr.mxu0 0.0
    %239 = vmatpush1.msra.mxu0 %v163
    %240 = vmatprep.subr.mxu0 0.0
    %241 = vmatpush1.msra.mxu0 %v164
    %242 = vmatprep.subr.mxu0 0.0
    %243 = vmatpush1.msra.mxu0 %v165
    %244 = vmatprep.subr.mxu0 0.0
    %245 = vmatpush1.msra.mxu0 %v166
    %246 = vmatprep.subr.mxu0 0.0
    %247 = vmatpush1.msra.mxu0 %v167
    %248 = vmatprep.subr.mxu0 0.0
    %249 = vmatpush1.msra.mxu0 %v168
    %250 = vmatprep.subr.mxu0 0.0
    %251 = vmatpush1.msra.mxu0 %v169
    %252 = vmatprep.mubr.f32.mxu0 %v185
    %253 = vmatmul.mubr.f32.gmra.mrb[0].mxu0 %v184
    %v254 = vpop.f32.mrb[0].mxu0
    %v255 = vadd.f32 %v175, %v254
    %v256 = vpop.f32.mrb[0].mxu0
    %257 = vdwg.mxu0
    %v258 = vmul.f32 %v255, 0.5
    %v259 = vmul.f32 %v255, 0.70710677
    %v260 = verf.f32.pop %v259
    %v261 = vadd.f32 %v260, 1.0
    %v262 = vmul.f32 %v258, %v261
    %v263 = vld [vmem:[%s4] sm:$0xff]
    %v264 = vld [vmem:[%s4 + $0x8] sm:$0xff]
    %v265 = vld [vmem:[%s4 + $0x10] sm:$0xff]
    %v266 = vld [vmem:[%s4 + $0x18] sm:$0xff]
    %v267 = vld [vmem:[#allocation7] sm:$0x1]
    %v269 = vlaneseq
    %v270 = vshrl.u32 %v269, 7
    %v271 = vsub.s32 0, %v270
    %v272 = vrot.slane %v267, %v271
    %vm274 = vcmask 261120
    %v276 = vsel %vm274, %v262, 0
    %278 = vmatprep.subr.mxu0 0.0
    %279 = vmatpush1.msra.mxu0 %v263
    %280 = vmatprep.subr.mxu0 0.0
    %281 = vmatpush1.msra.mxu0 %v264
    %282 = vmatprep.subr.mxu0 0.0
    %283 = vmatpush1.msra.mxu0 %v265
    %284 = vmatprep.subr.mxu0 0.0
    %285 = vmatpush1.msra.mxu0 %v266
    %286 = vmatprep.subr.mxu0 0.0
    %287 = vmatpush1.msra.mxu0 0.0
    %288 = vmatprep.subr.mxu0 0.0
    %289 = vmatpush1.msra.mxu0 0.0
    %290 = vmatprep.subr.mxu0 0.0
    %291 = vmatpush1.msra.mxu0 0.0
    %292 = vmatprep.subr.mxu0 0.0
    %293 = vmatpush1.msra.mxu0 0.0
    %294 = vmatprep.subr.mxu0 0.0
    %295 = vmatpush1.msra.mxu0 0.0
    %296 = vmatprep.subr.mxu0 0.0
    %297 = vmatpush1.msra.mxu0 0.0
    %298 = vmatprep.subr.mxu0 0.0
    %299 = vmatpush1.msra.mxu0 0.0
    %300 = vmatprep.subr.mxu0 0.0
    %301 = vmatpush1.msra.mxu0 0.0
    %302 = vmatprep.subr.mxu0 0.0
    %303 = vmatpush1.msra.mxu0 0.0
    %304 = vmatprep.subr.mxu0 0.0
    %305 = vmatpush1.msra.mxu0 0.0
    %306 = vmatprep.subr.mxu0 0.0
    %307 = vmatpush1.msra.mxu0 0.0
    %308 = vmatprep.subr.mxu0 0.0
    %309 = vmatpush1.msra.mxu0 0.0
    %310 = vmatprep.subr.mxu0 0.0
    %311 = vmatpush1.msra.mxu0 0.0
    %312 = vmatprep.subr.mxu0 0.0
    %313 = vmatpush1.msra.mxu0 0.0
    %314 = vmatprep.subr.mxu0 0.0
    %315 = vmatpush1.msra.mxu0 0.0
    %316 = vmatprep.subr.mxu0 0.0
    %317 = vmatpush1.msra.mxu0 0.0
    %318 = vmatprep.subr.mxu0 0.0
    %319 = vmatpush1.msra.mxu0 0.0
    %320 = vmatprep.subr.mxu0 0.0
    %321 = vmatpush1.msra.mxu0 0.0
    %322 = vmatprep.subr.mxu0 0.0
    %323 = vmatpush1.msra.mxu0 0.0
    %324 = vmatprep.subr.mxu0 0.0
    %325 = vmatpush1.msra.mxu0 0.0
    %326 = vmatprep.subr.mxu0 0.0
    %327 = vmatpush1.msra.mxu0 0.0
    %328 = vmatprep.subr.mxu0 0.0
    %329 = vmatpush1.msra.mxu0 0.0
    %330 = vmatprep.subr.mxu0 0.0
    %331 = vmatpush1.msra.mxu0 0.0
    %332 = vmatprep.subr.mxu0 0.0
    %333 = vmatpush1.msra.mxu0 0.0
    %334 = vmatprep.subr.mxu0 0.0
    %335 = vmatpush1.msra.mxu0 0.0
    %336 = vmatprep.subr.mxu0 0.0
    %337 = vmatpush1.msra.mxu0 0.0
    %338 = vmatprep.subr.mxu0 0.0
    %339 = vmatpush1.msra.mxu0 0.0
    %340 = vmatprep.subr.mxu0 0.0
    %341 = vmatpush1.msra.mxu0 0.0
    %342 = vmatprep.mubr.f32.mxu0 0.0
    %343 = vmatmul.mubr.f32.gmra.mrb[0].mxu0 %v276
    %v344 = vpop.f32.mrb[0].mxu0
    %v345 = vadd.f32 %v272, %v344
    %v346 = vpop.f32.mrb[0].mxu0
    %347 = vdwg.mxu0
    %v348 = vld [vmem:[%s6] sm:$0xff]
    %v349 = vld [vmem:[%s6 + $0x8] sm:$0xff]
    %v350 = vld [vmem:[%s6 + $0x10] sm:$0xff]
    %v351 = vld [vmem:[%s6 + $0x18] sm:$0xff]
    %v352 = vld [vmem:[%s7] sm:$0x1]
    %v354 = vlaneseq
    %v355 = vshrl.u32 %v354, 7
    %v356 = vsub.s32 0, %v355
    %v357 = vrot.slane %v352, %v356
    %v360 = vsel %vm274, %v345, 0
    %362 = vmatprep.subr.mxu0 0.0
    %363 = vmatpush1.msra.mxu0 %v348
    %364 = vmatprep.subr.mxu0 0.0
    %365 = vmatpush1.msra.mxu0 %v349
    %366 = vmatprep.subr.mxu0 0.0
    %367 = vmatpush1.msra.mxu0 %v350
    %368 = vmatprep.subr.mxu0 0.0
    %369 = vmatpush1.msra.mxu0 %v351
    %370 = vmatprep.subr.mxu0 0.0
    %371 = vmatpush1.msra.mxu0 0.0
    %372 = vmatprep.subr.mxu0 0.0
    %373 = vmatpush1.msra.mxu0 0.0
    %374 = vmatprep.subr.mxu0 0.0
    %375 = vmatpush1.msra.mxu0 0.0
    %376 = vmatprep.subr.mxu0 0.0
    %377 = vmatpush1.msra.mxu0 0.0
    %378 = vmatprep.subr.mxu0 0.0
    %379 = vmatpush1.msra.mxu0 0.0
    %380 = vmatprep.subr.mxu0 0.0
    %381 = vmatpush1.msra.mxu0 0.0
    %382 = vmatprep.subr.mxu0 0.0
    %383 = vmatpush1.msra.mxu0 0.0
    %384 = vmatprep.subr.mxu0 0.0
    %385 = vmatpush1.msra.mxu0 0.0
    %386 = vmatprep.subr.mxu0 0.0
    %387 = vmatpush1.msra.mxu0 0.0
    %388 = vmatprep.subr.mxu0 0.0
    %389 = vmatpush1.msra.mxu0 0.0
    %390 = vmatprep.subr.mxu0 0.0
    %391 = vmatpush1.msra.mxu0 0.0
    %392 = vmatprep.subr.mxu0 0.0
    %393 = vmatpush1.msra.mxu0 0.0
    %394 = vmatprep.subr.mxu0 0.0
    %395 = vmatpush1.msra.mxu0 0.0
    %396 = vmatprep.subr.mxu0 0.0
    %397 = vmatpush1.msra.mxu0 0.0
    %398 = vmatprep.subr.mxu0 0.0
    %399 = vmatpush1.msra.mxu0 0.0
    %400 = vmatprep.subr.mxu0 0.0
    %401 = vmatpush1.msra.mxu0 0.0
    %402 = vmatprep.subr.mxu0 0.0
    %403 = vmatpush1.msra.mxu0 0.0
    %404 = vmatprep.subr.mxu0 0.0
    %405 = vmatpush1.msra.mxu0 0.0
    %406 = vmatprep.subr.mxu0 0.0
    %407 = vmatpush1.msra.mxu0 0.0
    %408 = vmatprep.subr.mxu0 0.0
    %409 = vmatpush1.msra.mxu0 0.0
    %410 = vmatprep.subr.mxu0 0.0
    %411 = vmatpush1.msra.mxu0 0.0
    %412 = vmatprep.subr.mxu0 0.0
    %413 = vmatpush1.msra.mxu0 0.0
    %414 = vmatprep.subr.mxu0 0.0
    %415 = vmatpush1.msra.mxu0 0.0
    %416 = vmatprep.subr.mxu0 0.0
    %417 = vmatpush1.msra.mxu0 0.0
    %418 = vmatprep.subr.mxu0 0.0
    %419 = vmatpush1.msra.mxu0 0.0
    %420 = vmatprep.subr.mxu0 0.0
    %421 = vmatpush1.msra.mxu0 0.0
    %422 = vmatprep.subr.mxu0 0.0
    %423 = vmatpush1.msra.mxu0 0.0
    %424 = vmatprep.subr.mxu0 0.0
    %425 = vmatpush1.msra.mxu0 0.0
    %426 = vmatprep.mubr.f32.mxu0 0.0
    %427 = vmatmul.mubr.f32.gmra.mrb[0].mxu0 %v360
    %v428 = vpop.f32.mrb[0].mxu0
    %v429 = vadd.f32 %v357, %v428
    %v430 = vpop.f32.mrb[0].mxu0
    %431 = vdwg.mxu0
    %v432 = vmul.f32 %v429, 0.5
    %v433 = vmul.f32 %v429, 0.70710677
    %v434 = verf.f32.pop %v433
    %v435 = vadd.f32 %v434, 1.0
    %v436 = vmul.f32 %v432, %v435
    %v437 = vld [vmem:[%s8] sm:$0xff]
    %v438 = vld [vmem:[%s8 + $0x8] sm:$0xff]
    %v439 = vld [vmem:[%s8 + $0x10] sm:$0xff]
    %v440 = vld [vmem:[%s8 + $0x18] sm:$0xff]
    %v441 = vld [vmem:[%s9] sm:$0x1]
    %v443 = vlaneseq
    %v444 = vshrl.u32 %v443, 7
    %v445 = vsub.s32 0, %v444
    %v446 = vrot.slane %v441, %v445
    %v449 = vsel %vm274, %v436, 0
    %451 = vmatprep.subr.mxu0 0.0
    %452 = vmatpush1.msra.mxu0 %v437
    %453 = vmatprep.subr.mxu0 0.0
    %454 = vmatpush1.msra.mxu0 %v438
    %455 = vmatprep.subr.mxu0 0.0
    %456 = vmatpush1.msra.mxu0 %v439
    %457 = vmatprep.subr.mxu0 0.0
    %458 = vmatpush1.msra.mxu0 %v440
    %459 = vmatprep.subr.mxu0 0.0
    %460 = vmatpush1.msra.mxu0 0.0
    %461 = vmatprep.subr.mxu0 0.0
    %462 = vmatpush1.msra.mxu0 0.0
    %463 = vmatprep.subr.mxu0 0.0
    %464 = vmatpush1.msra.mxu0 0.0
    %465 = vmatprep.subr.mxu0 0.0
    %466 = vmatpush1.msra.mxu0 0.0
    %467 = vmatprep.subr.mxu0 0.0
    %468 = vmatpush1.msra.mxu0 0.0
    %469 = vmatprep.subr.mxu0 0.0
    %470 = vmatpush1.msra.mxu0 0.0
    %471 = vmatprep.subr.mxu0 0.0
    %472 = vmatpush1.msra.mxu0 0.0
    %473 = vmatprep.subr.mxu0 0.0
    %474 = vmatpush1.msra.mxu0 0.0
    %475 = vmatprep.subr.mxu0 0.0
    %476 = vmatpush1.msra.mxu0 0.0
    %477 = vmatprep.subr.mxu0 0.0
    %478 = vmatpush1.msra.mxu0 0.0
    %479 = vmatprep.subr.mxu0 0.0
    %480 = vmatpush1.msra.mxu0 0.0
    %481 = vmatprep.subr.mxu0 0.0
    %482 = vmatpush1.msra.mxu0 0.0
    %483 = vmatprep.subr.mxu0 0.0
    %484 = vmatpush1.msra.mxu0 0.0
    %485 = vmatprep.subr.mxu0 0.0
    %486 = vmatpush1.msra.mxu0 0.0
    %487 = vmatprep.subr.mxu0 0.0
    %488 = vmatpush1.msra.mxu0 0.0
    %489 = vmatprep.subr.mxu0 0.0
    %490 = vmatpush1.msra.mxu0 0.0
    %491 = vmatprep.subr.mxu0 0.0
    %492 = vmatpush1.msra.mxu0 0.0
    %493 = vmatprep.subr.mxu0 0.0
    %494 = vmatpush1.msra.mxu0 0.0
    %495 = vmatprep.subr.mxu0 0.0
    %496 = vmatpush1.msra.mxu0 0.0
    %497 = vmatprep.subr.mxu0 0.0
    %498 = vmatpush1.msra.mxu0 0.0
    %499 = vmatprep.subr.mxu0 0.0
    %500 = vmatpush1.msra.mxu0 0.0
    %501 = vmatprep.subr.mxu0 0.0
    %502 = vmatpush1.msra.mxu0 0.0
    %503 = vmatprep.subr.mxu0 0.0
    %504 = vmatpush1.msra.mxu0 0.0
    %505 = vmatprep.subr.mxu0 0.0
    %506 = vmatpush1.msra.mxu0 0.0
    %507 = vmatprep.subr.mxu0 0.0
    %508 = vmatpush1.msra.mxu0 0.0
    %509 = vmatprep.subr.mxu0 0.0
    %510 = vmatpush1.msra.mxu0 0.0
    %511 = vmatprep.subr.mxu0 0.0
    %512 = vmatpush1.msra.mxu0 0.0
    %513 = vmatprep.subr.mxu0 0.0
    %514 = vmatpush1.msra.mxu0 0.0
    %515 = vmatprep.mubr.f32.mxu0 0.0
    %516 = vmatmul.mubr.f32.gmra.mrb[0].mxu0 %v449
    %v517 = vpop.f32.mrb[0].mxu0
    %v518 = vadd.f32 %v446, %v517
    %v519 = vpop.f32.mrb[0].mxu0
    %520 = vdwg.mxu0
    %v521 = vadd.f32 %v518, %v345
    %v522 = vld [vmem:[%s10] sm:$0xff]
    %v523 = vld [vmem:[%s10 + $0x8] sm:$0xff]
    %v524 = vld [vmem:[%s10 + $0x10] sm:$0xff]
    %v525 = vld [vmem:[%s10 + $0x18] sm:$0xff]
    %v526 = vld [vmem:[%s11] sm:$0x1]
    %v528 = vlaneseq
    %v529 = vshrl.u32 %v528, 7
    %v530 = vsub.s32 0, %v529
    %v531 = vrot.slane %v526, %v530
    %v534 = vsel %vm274, %v521, 0
    %536 = vmatprep.subr.mxu0 0.0
    %537 = vmatpush1.msra.mxu0 %v522
    %538 = vmatprep.subr.mxu0 0.0
    %539 = vmatpush1.msra.mxu0 %v523
    %540 = vmatprep.subr.mxu0 0.0
    %541 = vmatpush1.msra.mxu0 %v524
    %542 = vmatprep.subr.mxu0 0.0
    %543 = vmatpush1.msra.mxu0 %v525
    %544 = vmatprep.subr.mxu0 0.0
    %545 = vmatpush1.msra.mxu0 0.0
    %546 = vmatprep.subr.mxu0 0.0
    %547 = vmatpush1.msra.mxu0 0.0
    %548 = vmatprep.subr.mxu0 0.0
    %549 = vmatpush1.msra.mxu0 0.0
    %550 = vmatprep.subr.mxu0 0.0
    %551 = vmatpush1.msra.mxu0 0.0
    %552 = vmatprep.subr.mxu0 0.0
    %553 = vmatpush1.msra.mxu0 0.0
    %554 = vmatprep.subr.mxu0 0.0
    %555 = vmatpush1.msra.mxu0 0.0
    %556 = vmatprep.subr.mxu0 0.0
    %557 = vmatpush1.msra.mxu0 0.0
    %558 = vmatprep.subr.mxu0 0.0
    %559 = vmatpush1.msra.mxu0 0.0
    %560 = vmatprep.subr.mxu0 0.0
    %561 = vmatpush1.msra.mxu0 0.0
    %562 = vmatprep.subr.mxu0 0.0
    %563 = vmatpush1.msra.mxu0 0.0
    %564 = vmatprep.subr.mxu0 0.0
    %565 = vmatpush1.msra.mxu0 0.0
    %566 = vmatprep.subr.mxu0 0.0
    %567 = vmatpush1.msra.mxu0 0.0
    %568 = vmatprep.subr.mxu0 0.0
    %569 = vmatpush1.msra.mxu0 0.0
    %570 = vmatprep.subr.mxu0 0.0
    %571 = vmatpush1.msra.mxu0 0.0
    %572 = vmatprep.subr.mxu0 0.0
    %573 = vmatpush1.msra.mxu0 0.0
    %574 = vmatprep.subr.mxu0 0.0
    %575 = vmatpush1.msra.mxu0 0.0
    %576 = vmatprep.subr.mxu0 0.0
    %577 = vmatpush1.msra.mxu0 0.0
    %578 = vmatprep.subr.mxu0 0.0
    %579 = vmatpush1.msra.mxu0 0.0
    %580 = vmatprep.subr.mxu0 0.0
    %581 = vmatpush1.msra.mxu0 0.0
    %582 = vmatprep.subr.mxu0 0.0
    %583 = vmatpush1.msra.mxu0 0.0
    %584 = vmatprep.subr.mxu0 0.0
    %585 = vmatpush1.msra.mxu0 0.0
    %586 = vmatprep.subr.mxu0 0.0
    %587 = vmatpush1.msra.mxu0 0.0
    %588 = vmatprep.subr.mxu0 0.0
    %589 = vmatpush1.msra.mxu0 0.0
    %590 = vmatprep.subr.mxu0 0.0
    %591 = vmatpush1.msra.mxu0 0.0
    %592 = vmatprep.subr.mxu0 0.0
    %593 = vmatpush1.msra.mxu0 0.0
    %594 = vmatprep.subr.mxu0 0.0
    %595 = vmatpush1.msra.mxu0 0.0
    %596 = vmatprep.subr.mxu0 0.0
    %597 = vmatpush1.msra.mxu0 0.0
    %598 = vmatprep.subr.mxu0 0.0
    %599 = vmatpush1.msra.mxu0 0.0
    %600 = vmatprep.mubr.f32.mxu0 0.0
    %601 = vmatmul.mubr.f32.gmra.mrb[0].mxu0 %v534
    %v602 = vpop.f32.mrb[0].mxu0
    %v603 = vadd.f32 %v531, %v602
    %v604 = vpop.f32.mrb[0].mxu0
    %605 = vdwg.mxu0
    %v606 = vmul.f32 %v603, 0.5
    %v607 = vmul.f32 %v603, 0.70710677
    %v608 = verf.f32.pop %v607
    %v609 = vadd.f32 %v608, 1.0
    %v610 = vmul.f32 %v606, %v609
    %v611 = vld [vmem:[%s12] sm:$0xff]
    %v612 = vld [vmem:[%s12 + $0x8] sm:$0xff]
    %v613 = vld [vmem:[%s12 + $0x10] sm:$0xff]
    %v614 = vld [vmem:[%s12 + $0x18] sm:$0xff]
    %v615 = vld [vmem:[%s13] sm:$0x1]
    %v617 = vlaneseq
    %v618 = vshrl.u32 %v617, 7
    %v619 = vsub.s32 0, %v618
    %v620 = vrot.slane %v615, %v619
    %v623 = vsel %vm274, %v610, 0
    %625 = vmatprep.subr.mxu0 0.0
    %626 = vmatpush1.msra.mxu0 %v611
    %627 = vmatprep.subr.mxu0 0.0
    %628 = vmatpush1.msra.mxu0 %v612
    %629 = vmatprep.subr.mxu0 0.0
    %630 = vmatpush1.msra.mxu0 %v613
    %631 = vmatprep.subr.mxu0 0.0
    %632 = vmatpush1.msra.mxu0 %v614
    %633 = vmatprep.subr.mxu0 0.0
    %634 = vmatpush1.msra.mxu0 0.0
    %635 = vmatprep.subr.mxu0 0.0
    %636 = vmatpush1.msra.mxu0 0.0
    %637 = vmatprep.subr.mxu0 0.0
    %638 = vmatpush1.msra.mxu0 0.0
    %639 = vmatprep.subr.mxu0 0.0
    %640 = vmatpush1.msra.mxu0 0.0
    %641 = vmatprep.subr.mxu0 0.0
    %642 = vmatpush1.msra.mxu0 0.0
    %643 = vmatprep.subr.mxu0 0.0
    %644 = vmatpush1.msra.mxu0 0.0
    %645 = vmatprep.subr.mxu0 0.0
    %646 = vmatpush1.msra.mxu0 0.0
    %647 = vmatprep.subr.mxu0 0.0
    %648 = vmatpush1.msra.mxu0 0.0
    %649 = vmatprep.subr.mxu0 0.0
    %650 = vmatpush1.msra.mxu0 0.0
    %651 = vmatprep.subr.mxu0 0.0
    %652 = vmatpush1.msra.mxu0 0.0
    %653 = vmatprep.subr.mxu0 0.0
    %654 = vmatpush1.msra.mxu0 0.0
    %655 = vmatprep.subr.mxu0 0.0
    %656 = vmatpush1.msra.mxu0 0.0
    %657 = vmatprep.subr.mxu0 0.0
    %658 = vmatpush1.msra.mxu0 0.0
    %659 = vmatprep.subr.mxu0 0.0
    %660 = vmatpush1.msra.mxu0 0.0
    %661 = vmatprep.subr.mxu0 0.0
    %662 = vmatpush1.msra.mxu0 0.0
    %663 = vmatprep.subr.mxu0 0.0
    %664 = vmatpush1.msra.mxu0 0.0
    %665 = vmatprep.subr.mxu0 0.0
    %666 = vmatpush1.msra.mxu0 0.0
    %667 = vmatprep.subr.mxu0 0.0
    %668 = vmatpush1.msra.mxu0 0.0
    %669 = vmatprep.subr.mxu0 0.0
    %670 = vmatpush1.msra.mxu0 0.0
    %671 = vmatprep.subr.mxu0 0.0
    %672 = vmatpush1.msra.mxu0 0.0
    %673 = vmatprep.subr.mxu0 0.0
    %674 = vmatpush1.msra.mxu0 0.0
    %675 = vmatprep.subr.mxu0 0.0
    %676 = vmatpush1.msra.mxu0 0.0
    %677 = vmatprep.subr.mxu0 0.0
    %678 = vmatpush1.msra.mxu0 0.0
    %679 = vmatprep.subr.mxu0 0.0
    %680 = vmatpush1.msra.mxu0 0.0
    %681 = vmatprep.subr.mxu0 0.0
    %682 = vmatpush1.msra.mxu0 0.0
    %683 = vmatprep.subr.mxu0 0.0
    %684 = vmatpush1.msra.mxu0 0.0
    %685 = vmatprep.subr.mxu0 0.0
    %686 = vmatpush1.msra.mxu0 0.0
    %687 = vmatprep.subr.mxu0 0.0
    %688 = vmatpush1.msra.mxu0 0.0
    %689 = vmatprep.mubr.f32.mxu0 0.0
    %690 = vmatmul.mubr.f32.gmra.mrb[0].mxu0 %v623
    %v691 = vpop.f32.mrb[0].mxu0
    %v692 = vadd.f32 %v620, %v691
    %v693 = vpop.f32.mrb[0].mxu0
    %694 = vdwg.mxu0
    %v695 = vadd.f32 %v692, %v521
    %v696 = vld [vmem:[%s1] sm:$0x3]
    %v697 = vmul.f32 %v695, 0.5
    %v698 = vmul.f32 %v697, 1.442695
    %v699 = vpow.pop %v698
    %701 = vrot.lane.b32.xlu0 %v696, 16
    %v702 = vpop.permute.xlu0 %701
    %v704 = vmul.f32 %v699, %v702
    %706 = vrot.lane.b32.xlu0 %v704, 112
    %v707 = vpop.permute.xlu0 %706
    %v709 = vadd.f32 %v695, %v707
    %v710 = vadd.f32 %v695, 1.0
    %v711 = vmul.f32 %v695, 1.442695
    %v712 = vpow.pop %v711
    %v713 = vsub.f32 %v710, %v712
    %v714 = vmul.f32 %v695, %v695
    %716 = vrot.lane.b32.xlu0 %v714, 16
    %v717 = vpop.permute.xlu0 %716
    %v719 = vsub.f32 %v713, %v717
    %721 = vrot.lane.b32.xlu0 %v719, 112
    %v722 = vpop.permute.xlu0 %721
    %vm724 = vcmask 123904
    %v725 = vsel %vm724, %v722, 0.0
    %726 = vadd.xlane.f32.xlu0 %v725
    %v727 = vpop.xlane.xlu0 %726
    %v728 = vmul.f32 %v727, -0.5
    %vm729 = vcmask 1041408
    %v730 = vsel %vm729, %v728, 0.0
    %v731 = vrot.slane %v730, 4
    %v732 = vadd.f32 %v730, %v731
    %v733 = vrot.slane %v732, 2
    %v734 = vadd.f32 %v732, %v733
    %v735 = vrot.slane %v734, 1
    %v736 = vadd.f32 %v734, %v735
    %v737 = vrcp.pop 2.0
    %v738 = vmul.f32 %v736, %v737
    %vm739 = vcmask 0
    %740 = vst.msk [vmem:[#allocation13] sm:$0x1] %vm739, %v738
    %v741 = vld [vmem:[%s14] sm:$0xff]
    %v742 = vld [vmem:[%s14 + $0x8] sm:$0xff]
    %v743 = vld [vmem:[%s15] sm:$0x1]
    %v745 = vlaneseq
    %v746 = vshrl.u32 %v745, 7
    %v747 = vsub.s32 0, %v746
    %v748 = vrot.slane %v743, %v747
    %vm750 = vcmask 130048
    %v752 = vsel %vm750, %v709, 0
    %754 = vmatprep.subr.mxu0 0.0
    %755 = vmatpush1.msra.mxu0 %v741
    %756 = vmatprep.subr.mxu0 0.0
    %757 = vmatpush1.msra.mxu0 %v742
    %758 = vmatprep.subr.mxu0 0.0
    %759 = vmatpush1.msra.mxu0 0.0
    %760 = vmatprep.subr.mxu0 0.0
    %761 = vmatpush1.msra.mxu0 0.0
    %762 = vmatprep.subr.mxu0 0.0
    %763 = vmatpush1.msra.mxu0 0.0
    %764 = vmatprep.subr.mxu0 0.0
    %765 = vmatpush1.msra.mxu0 0.0
    %766 = vmatprep.subr.mxu0 0.0
    %767 = vmatpush1.msra.mxu0 0.0
    %768 = vmatprep.subr.mxu0 0.0
    %769 = vmatpush1.msra.mxu0 0.0
    %770 = vmatprep.subr.mxu0 0.0
    %771 = vmatpush1.msra.mxu0 0.0
    %772 = vmatprep.subr.mxu0 0.0
    %773 = vmatpush1.msra.mxu0 0.0
    %774 = vmatprep.subr.mxu0 0.0
    %775 = vmatpush1.msra.mxu0 0.0
    %776 = vmatprep.subr.mxu0 0.0
    %777 = vmatpush1.msra.mxu0 0.0
    %778 = vmatprep.subr.mxu0 0.0
    %779 = vmatpush1.msra.mxu0 0.0
    %780 = vmatprep.subr.mxu0 0.0
    %781 = vmatpush1.msra.mxu0 0.0
    %782 = vmatprep.subr.mxu0 0.0
    %783 = vmatpush1.msra.mxu0 0.0
    %784 = vmatprep.subr.mxu0 0.0
    %785 = vmatpush1.msra.mxu0 0.0
    %786 = vmatprep.subr.mxu0 0.0
    %787 = vmatpush1.msra.mxu0 0.0
    %788 = vmatprep.subr.mxu0 0.0
    %789 = vmatpush1.msra.mxu0 0.0
    %790 = vmatprep.subr.mxu0 0.0
    %791 = vmatpush1.msra.mxu0 0.0
    %792 = vmatprep.subr.mxu0 0.0
    %793 = vmatpush1.msra.mxu0 0.0
    %794 = vmatprep.subr.mxu0 0.0
    %795 = vmatpush1.msra.mxu0 0.0
    %796 = vmatprep.subr.mxu0 0.0
    %797 = vmatpush1.msra.mxu0 0.0
    %798 = vmatprep.subr.mxu0 0.0
    %799 = vmatpush1.msra.mxu0 0.0
    %800 = vmatprep.subr.mxu0 0.0
    %801 = vmatpush1.msra.mxu0 0.0
    %802 = vmatprep.subr.mxu0 0.0
    %803 = vmatpush1.msra.mxu0 0.0
    %804 = vmatprep.subr.mxu0 0.0
    %805 = vmatpush1.msra.mxu0 0.0
    %806 = vmatprep.subr.mxu0 0.0
    %807 = vmatpush1.msra.mxu0 0.0
    %808 = vmatprep.subr.mxu0 0.0
    %809 = vmatpush1.msra.mxu0 0.0
    %810 = vmatprep.subr.mxu0 0.0
    %811 = vmatpush1.msra.mxu0 0.0
    %812 = vmatprep.subr.mxu0 0.0
    %813 = vmatpush1.msra.mxu0 0.0
    %814 = vmatprep.subr.mxu0 0.0
    %815 = vmatpush1.msra.mxu0 0.0
    %816 = vmatprep.subr.mxu0 0.0
    %817 = vmatpush1.msra.mxu0 0.0
    %818 = vmatprep.mubr.f32.mxu0 0.0
    %819 = vmatmul.mubr.f32.gmra.mrb[0].mxu0 %v752
    %v820 = vpop.f32.mrb[0].mxu0
    %v821 = vadd.f32 %v748, %v820
    %v822 = vpop.f32.mrb[0].mxu0
    %823 = vdwg.mxu0
    %v824 = vmul.f32 %v821, 0.5
    %v825 = vmul.f32 %v821, 0.70710677
    %v826 = verf.f32.pop %v825
    %v827 = vadd.f32 %v826, 1.0
    %v828 = vmul.f32 %v824, %v827
    %v829 = vld [vmem:[%s16] sm:$0xff]
    %v830 = vld [vmem:[%s16 + $0x8] sm:$0xff]
    %v831 = vld [vmem:[%s16 + $0x10] sm:$0xff]
    %v832 = vld [vmem:[%s16 + $0x18] sm:$0xff]
    %v833 = vld [vmem:[%s17] sm:$0x1]
    %v835 = vlaneseq
    %v836 = vshrl.u32 %v835, 7
    %v837 = vsub.s32 0, %v836
    %v838 = vrot.slane %v833, %v837
    %v841 = vsel %vm274, %v828, 0
    %843 = vmatprep.subr.mxu0 0.0
    %844 = vmatpush1.msra.mxu0 %v829
    %845 = vmatprep.subr.mxu0 0.0
    %846 = vmatpush1.msra.mxu0 %v830
    %847 = vmatprep.subr.mxu0 0.0
    %848 = vmatpush1.msra.mxu0 %v831
    %849 = vmatprep.subr.mxu0 0.0
    %850 = vmatpush1.msra.mxu0 %v832
    %851 = vmatprep.subr.mxu0 0.0
    %852 = vmatpush1.msra.mxu0 0.0
    %853 = vmatprep.subr.mxu0 0.0
    %854 = vmatpush1.msra.mxu0 0.0
    %855 = vmatprep.subr.mxu0 0.0
    %856 = vmatpush1.msra.mxu0 0.0
    %857 = vmatprep.subr.mxu0 0.0
    %858 = vmatpush1.msra.mxu0 0.0
    %859 = vmatprep.subr.mxu0 0.0
    %860 = vmatpush1.msra.mxu0 0.0
    %861 = vmatprep.subr.mxu0 0.0
    %862 = vmatpush1.msra.mxu0 0.0
    %863 = vmatprep.subr.mxu0 0.0
    %864 = vmatpush1.msra.mxu0 0.0
    %865 = vmatprep.subr.mxu0 0.0
    %866 = vmatpush1.msra.mxu0 0.0
    %867 = vmatprep.subr.mxu0 0.0
    %868 = vmatpush1.msra.mxu0 0.0
    %869 = vmatprep.subr.mxu0 0.0
    %870 = vmatpush1.msra.mxu0 0.0
    %871 = vmatprep.subr.mxu0 0.0
    %872 = vmatpush1.msra.mxu0 0.0
    %873 = vmatprep.subr.mxu0 0.0
    %874 = vmatpush1.msra.mxu0 0.0
    %875 = vmatprep.subr.mxu0 0.0
    %876 = vmatpush1.msra.mxu0 0.0
    %877 = vmatprep.subr.mxu0 0.0
    %878 = vmatpush1.msra.mxu0 0.0
    %879 = vmatprep.subr.mxu0 0.0
    %880 = vmatpush1.msra.mxu0 0.0
    %881 = vmatprep.subr.mxu0 0.0
    %882 = vmatpush1.msra.mxu0 0.0
    %883 = vmatprep.subr.mxu0 0.0
    %884 = vmatpush1.msra.mxu0 0.0
    %885 = vmatprep.subr.mxu0 0.0
    %886 = vmatpush1.msra.mxu0 0.0
    %887 = vmatprep.subr.mxu0 0.0
    %888 = vmatpush1.msra.mxu0 0.0
    %889 = vmatprep.subr.mxu0 0.0
    %890 = vmatpush1.msra.mxu0 0.0
    %891 = vmatprep.subr.mxu0 0.0
    %892 = vmatpush1.msra.mxu0 0.0
    %893 = vmatprep.subr.mxu0 0.0
    %894 = vmatpush1.msra.mxu0 0.0
    %895 = vmatprep.subr.mxu0 0.0
    %896 = vmatpush1.msra.mxu0 0.0
    %897 = vmatprep.subr.mxu0 0.0
    %898 = vmatpush1.msra.mxu0 0.0
    %899 = vmatprep.subr.mxu0 0.0
    %900 = vmatpush1.msra.mxu0 0.0
    %901 = vmatprep.subr.mxu0 0.0
    %902 = vmatpush1.msra.mxu0 0.0
    %903 = vmatprep.subr.mxu0 0.0
    %904 = vmatpush1.msra.mxu0 0.0
    %905 = vmatprep.subr.mxu0 0.0
    %906 = vmatpush1.msra.mxu0 0.0
    %907 = vmatprep.mubr.f32.mxu0 0.0
    %908 = vmatmul.mubr.f32.gmra.mrb[0].mxu0 %v841
    %v909 = vpop.f32.mrb[0].mxu0
    %v910 = vadd.f32 %v838, %v909
    %v911 = vpop.f32.mrb[0].mxu0
    %912 = vdwg.mxu0
    %v913 = vld [vmem:[%s18] sm:$0xff]
    %v914 = vld [vmem:[%s18 + $0x8] sm:$0xff]
    %v915 = vld [vmem:[%s18 + $0x10] sm:$0xff]
    %v916 = vld [vmem:[%s18 + $0x18] sm:$0xff]
    %v917 = vld [vmem:[%s19] sm:$0x1]
    %v919 = vlaneseq
    %v920 = vshrl.u32 %v919, 7
    %v921 = vsub.s32 0, %v920
    %v922 = vrot.slane %v917, %v921
    %v925 = vsel %vm274, %v910, 0
    %927 = vmatprep.subr.mxu0 0.0
    %928 = vmatpush1.msra.mxu0 %v913
    %929 = vmatprep.subr.mxu0 0.0
    %930 = vmatpush1.msra.mxu0 %v914
    %931 = vmatprep.subr.mxu0 0.0
    %932 = vmatpush1.msra.mxu0 %v915
    %933 = vmatprep.subr.mxu0 0.0
    %934 = vmatpush1.msra.mxu0 %v916
    %935 = vmatprep.subr.mxu0 0.0
    %936 = vmatpush1.msra.mxu0 0.0
    %937 = vmatprep.subr.mxu0 0.0
    %938 = vmatpush1.msra.mxu0 0.0
    %939 = vmatprep.subr.mxu0 0.0
    %940 = vmatpush1.msra.mxu0 0.0
    %941 = vmatprep.subr.mxu0 0.0
    %942 = vmatpush1.msra.mxu0 0.0
    %943 = vmatprep.subr.mxu0 0.0
    %944 = vmatpush1.msra.mxu0 0.0
    %945 = vmatprep.subr.mxu0 0.0
    %946 = vmatpush1.msra.mxu0 0.0
    %947 = vmatprep.subr.mxu0 0.0
    %948 = vmatpush1.msra.mxu0 0.0
    %949 = vmatprep.subr.mxu0 0.0
    %950 = vmatpush1.msra.mxu0 0.0
    %951 = vmatprep.subr.mxu0 0.0
    %952 = vmatpush1.msra.mxu0 0.0
    %953 = vmatprep.subr.mxu0 0.0
    %954 = vmatpush1.msra.mxu0 0.0
    %955 = vmatprep.subr.mxu0 0.0
    %956 = vmatpush1.msra.mxu0 0.0
    %957 = vmatprep.subr.mxu0 0.0
    %958 = vmatpush1.msra.mxu0 0.0
    %959 = vmatprep.subr.mxu0 0.0
    %960 = vmatpush1.msra.mxu0 0.0
    %961 = vmatprep.subr.mxu0 0.0
    %962 = vmatpush1.msra.mxu0 0.0
    %963 = vmatprep.subr.mxu0 0.0
    %964 = vmatpush1.msra.mxu0 0.0
    %965 = vmatprep.subr.mxu0 0.0
    %966 = vmatpush1.msra.mxu0 0.0
    %967 = vmatprep.subr.mxu0 0.0
    %968 = vmatpush1.msra.mxu0 0.0
    %969 = vmatprep.subr.mxu0 0.0
    %970 = vmatpush1.msra.mxu0 0.0
    %971 = vmatprep.subr.mxu0 0.0
    %972 = vmatpush1.msra.mxu0 0.0
    %973 = vmatprep.subr.mxu0 0.0
    %974 = vmatpush1.msra.mxu0 0.0
    %975 = vmatprep.subr.mxu0 0.0
    %976 = vmatpush1.msra.mxu0 0.0
    %977 = vmatprep.subr.mxu0 0.0
    %978 = vmatpush1.msra.mxu0 0.0
    %979 = vmatprep.subr.mxu0 0.0
    %980 = vmatpush1.msra.mxu0 0.0
    %981 = vmatprep.subr.mxu0 0.0
    %982 = vmatpush1.msra.mxu0 0.0
    %983 = vmatprep.subr.mxu0 0.0
    %984 = vmatpush1.msra.mxu0 0.0
    %985 = vmatprep.subr.mxu0 0.0
    %986 = vmatpush1.msra.mxu0 0.0
    %987 = vmatprep.subr.mxu0 0.0
    %988 = vmatpush1.msra.mxu0 0.0
    %989 = vmatprep.subr.mxu0 0.0
    %990 = vmatpush1.msra.mxu0 0.0
    %991 = vmatprep.mubr.f32.mxu0 0.0
    %992 = vmatmul.mubr.f32.gmra.mrb[0].mxu0 %v925
    %v993 = vpop.f32.mrb[0].mxu0
    %v994 = vadd.f32 %v922, %v993
    %v995 = vpop.f32.mrb[0].mxu0
    %996 = vdwg.mxu0
    %v997 = vmul.f32 %v994, 0.5
    %v998 = vmul.f32 %v994, 0.70710677
    %v999 = verf.f32.pop %v998
    %v1000 = vadd.f32 %v999, 1.0
    %v1001 = vmul.f32 %v997, %v1000
    %v1002 = vld [vmem:[%s20] sm:$0xff]
    %v1003 = vld [vmem:[%s20 + $0x8] sm:$0xff]
    %v1004 = vld [vmem:[%s20 + $0x10] sm:$0xff]
    %v1005 = vld [vmem:[%s20 + $0x18] sm:$0xff]
    %v1006 = vld [vmem:[%s21] sm:$0x1]
    %v1008 = vlaneseq
    %v1009 = vshrl.u32 %v1008, 7
    %v1010 = vsub.s32 0, %v1009
    %v1011 = vrot.slane %v1006, %v1010
    %v1014 = vsel %vm274, %v1001, 0
    %1016 = vmatprep.subr.mxu0 0.0
    %1017 = vmatpush1.msra.mxu0 %v1002
    %1018 = vmatprep.subr.mxu0 0.0
    %1019 = vmatpush1.msra.mxu0 %v1003
    %1020 = vmatprep.subr.mxu0 0.0
    %1021 = vmatpush1.msra.mxu0 %v1004
    %1022 = vmatprep.subr.mxu0 0.0
    %1023 = vmatpush1.msra.mxu0 %v1005
    %1024 = vmatprep.subr.mxu0 0.0
    %1025 = vmatpush1.msra.mxu0 0.0
    %1026 = vmatprep.subr.mxu0 0.0
    %1027 = vmatpush1.msra.mxu0 0.0
    %1028 = vmatprep.subr.mxu0 0.0
    %1029 = vmatpush1.msra.mxu0 0.0
    %1030 = vmatprep.subr.mxu0 0.0
    %1031 = vmatpush1.msra.mxu0 0.0
    %1032 = vmatprep.subr.mxu0 0.0
    %1033 = vmatpush1.msra.mxu0 0.0
    %1034 = vmatprep.subr.mxu0 0.0
    %1035 = vmatpush1.msra.mxu0 0.0
    %1036 = vmatprep.subr.mxu0 0.0
    %1037 = vmatpush1.msra.mxu0 0.0
    %1038 = vmatprep.subr.mxu0 0.0
    %1039 = vmatpush1.msra.mxu0 0.0
    %1040 = vmatprep.subr.mxu0 0.0
    %1041 = vmatpush1.msra.mxu0 0.0
    %1042 = vmatprep.subr.mxu0 0.0
    %1043 = vmatpush1.msra.mxu0 0.0
    %1044 = vmatprep.subr.mxu0 0.0
    %1045 = vmatpush1.msra.mxu0 0.0
    %1046 = vmatprep.subr.mxu0 0.0
    %1047 = vmatpush1.msra.mxu0 0.0
    %1048 = vmatprep.subr.mxu0 0.0
    %1049 = vmatpush1.msra.mxu0 0.0
    %1050 = vmatprep.subr.mxu0 0.0
    %1051 = vmatpush1.msra.mxu0 0.0
    %1052 = vmatprep.subr.mxu0 0.0
    %1053 = vmatpush1.msra.mxu0 0.0
    %1054 = vmatprep.subr.mxu0 0.0
    %1055 = vmatpush1.msra.mxu0 0.0
    %1056 = vmatprep.subr.mxu0 0.0
    %1057 = vmatpush1.msra.mxu0 0.0
    %1058 = vmatprep.subr.mxu0 0.0
    %1059 = vmatpush1.msra.mxu0 0.0
    %1060 = vmatprep.subr.mxu0 0.0
    %1061 = vmatpush1.msra.mxu0 0.0
    %1062 = vmatprep.subr.mxu0 0.0
    %1063 = vmatpush1.msra.mxu0 0.0
    %1064 = vmatprep.subr.mxu0 0.0
    %1065 = vmatpush1.msra.mxu0 0.0
    %1066 = vmatprep.subr.mxu0 0.0
    %1067 = vmatpush1.msra.mxu0 0.0
    %1068 = vmatprep.subr.mxu0 0.0
    %1069 = vmatpush1.msra.mxu0 0.0
    %1070 = vmatprep.subr.mxu0 0.0
    %1071 = vmatpush1.msra.mxu0 0.0
    %1072 = vmatprep.subr.mxu0 0.0
    %1073 = vmatpush1.msra.mxu0 0.0
    %1074 = vmatprep.subr.mxu0 0.0
    %1075 = vmatpush1.msra.mxu0 0.0
    %1076 = vmatprep.subr.mxu0 0.0
    %1077 = vmatpush1.msra.mxu0 0.0
    %1078 = vmatprep.subr.mxu0 0.0
    %1079 = vmatpush1.msra.mxu0 0.0
    %1080 = vmatprep.mubr.f32.mxu0 0.0
    %1081 = vmatmul.mubr.f32.gmra.mrb[0].mxu0 %v1014
    %v1082 = vpop.f32.mrb[0].mxu0
    %v1083 = vadd.f32 %v1011, %v1082
    %v1084 = vpop.f32.mrb[0].mxu0
    %1085 = vdwg.mxu0
    %v1086 = vadd.f32 %v1083, %v910
    %v1087 = vld [vmem:[%s22] sm:$0xff]
    %v1088 = vld [vmem:[%s22 + $0x8] sm:$0xff]
    %v1089 = vld [vmem:[%s22 + $0x10] sm:$0xff]
    %v1090 = vld [vmem:[%s22 + $0x18] sm:$0xff]
    %v1091 = vld [vmem:[%s22 + $0x20] sm:$0xff]
    %v1092 = vld [vmem:[%s22 + $0x28] sm:$0xff]
    %v1093 = vld [vmem:[%s22 + $0x30] sm:$0xff]
    %v1094 = vld [vmem:[%s22 + $0x38] sm:$0xff]
    %v1095 = vld [vmem:[%s23] sm:$0x3]
    %v1097 = vlaneseq
    %v1098 = vshrl.u32 %v1097, 7
    %v1099 = vsub.s32 0, %v1098
    %v1100 = vrot.slane %v1095, %v1099
    %v1101 = vlaneseq
    %v1102 = vshrl.u32 %v1101, 7
    %v1103 = vsub.s32 1, %v1102
    %v1104 = vrot.slane %v1095, %v1103
    %v1108 = vsel %vm274, %v1086, 0
    %1110 = vmatprep.subr.mxu0 %v1088
    %1111 = vmatpush1.msra.mxu0 %v1087
    %1112 = vmatprep.subr.mxu0 %v1090
    %1113 = vmatpush1.msra.mxu0 %v1089
    %1114 = vmatprep.subr.mxu0 %v1092
    %1115 = vmatpush1.msra.mxu0 %v1091
    %1116 = vmatprep.subr.mxu0 %v1094
    %1117 = vmatpush1.msra.mxu0 %v1093
    %1118 = vmatprep.subr.mxu0 0.0
    %1119 = vmatpush1.msra.mxu0 0.0
    %1120 = vmatprep.subr.mxu0 0.0
    %1121 = vmatpush1.msra.mxu0 0.0
    %1122 = vmatprep.subr.mxu0 0.0
    %1123 = vmatpush1.msra.mxu0 0.0
    %1124 = vmatprep.subr.mxu0 0.0
    %1125 = vmatpush1.msra.mxu0 0.0
    %1126 = vmatprep.subr.mxu0 0.0
    %1127 = vmatpush1.msra.mxu0 0.0
    %1128 = vmatprep.subr.mxu0 0.0
    %1129 = vmatpush1.msra.mxu0 0.0
    %1130 = vmatprep.subr.mxu0 0.0
    %1131 = vmatpush1.msra.mxu0 0.0
    %1132 = vmatprep.subr.mxu0 0.0
    %1133 = vmatpush1.msra.mxu0 0.0
    %1134 = vmatprep.subr.mxu0 0.0
    %1135 = vmatpush1.msra.mxu0 0.0
    %1136 = vmatprep.subr.mxu0 0.0
    %1137 = vmatpush1.msra.mxu0 0.0
    %1138 = vmatprep.subr.mxu0 0.0
    %1139 = vmatpush1.msra.mxu0 0.0
    %1140 = vmatprep.subr.mxu0 0.0
    %1141 = vmatpush1.msra.mxu0 0.0
    %1142 = vmatprep.subr.mxu0 0.0
    %1143 = vmatpush1.msra.mxu0 0.0
    %1144 = vmatprep.subr.mxu0 0.0
    %1145 = vmatpush1.msra.mxu0 0.0
    %1146 = vmatprep.subr.mxu0 0.0
    %1147 = vmatpush1.msra.mxu0 0.0
    %1148 = vmatprep.subr.mxu0 0.0
    %1149 = vmatpush1.msra.mxu0 0.0
    %1150 = vmatprep.subr.mxu0 0.0
    %1151 = vmatpush1.msra.mxu0 0.0
    %1152 = vmatprep.subr.mxu0 0.0
    %1153 = vmatpush1.msra.mxu0 0.0
    %1154 = vmatprep.subr.mxu0 0.0
    %1155 = vmatpush1.msra.mxu0 0.0
    %1156 = vmatprep.subr.mxu0 0.0
    %1157 = vmatpush1.msra.mxu0 0.0
    %1158 = vmatprep.subr.mxu0 0.0
    %1159 = vmatpush1.msra.mxu0 0.0
    %1160 = vmatprep.subr.mxu0 0.0
    %1161 = vmatpush1.msra.mxu0 0.0
    %1162 = vmatprep.subr.mxu0 0.0
    %1163 = vmatpush1.msra.mxu0 0.0
    %1164 = vmatprep.subr.mxu0 0.0
    %1165 = vmatpush1.msra.mxu0 0.0
    %1166 = vmatprep.subr.mxu0 0.0
    %1167 = vmatpush1.msra.mxu0 0.0
    %1168 = vmatprep.subr.mxu0 0.0
    %1169 = vmatpush1.msra.mxu0 0.0
    %1170 = vmatprep.subr.mxu0 0.0
    %1171 = vmatpush1.msra.mxu0 0.0
    %1172 = vmatprep.subr.mxu0 0.0
    %1173 = vmatpush1.msra.mxu0 0.0
    %1174 = vmatprep.mubr.f32.mxu0 0.0
    %1175 = vmatmul.mubr.f32.gmra.mrb[0].mxu0 %v1108
    %v1176 = vpop.f32.mrb[0].mxu0
    %v1177 = vadd.f32 %v1100, %v1176
    %v1178 = vpop.f32.mrb[0].mxu0
    %v1179 = vadd.f32 %v1104, %v1178
    %1180 = vdwg.mxu0
    %v1181 = vmul.f32 %v1177, 0.5
    %v1182 = vmul.f32 %v1179, 0.5
    %v1183 = vmul.f32 %v1177, 0.70710677
    %v1184 = vmul.f32 %v1179, 0.70710677
    %v1185 = verf.f32.pop %v1183
    %v1186 = verf.f32.pop %v1184
    %v1187 = vadd.f32 %v1185, 1.0
    %v1188 = vadd.f32 %v1186, 1.0
    %v1189 = vmul.f32 %v1181, %v1187
    %v1190 = vmul.f32 %v1182, %v1188
    %v1191 = vld [vmem:[#allocation8] sm:$0xff]
    %v1192 = vld [vmem:[#allocation8 + $0x8] sm:$0xff]
    %v1193 = vld [vmem:[#allocation8 + $0x10] sm:$0xff]
    %v1194 = vld [vmem:[#allocation8 + $0x18] sm:$0xff]
    %v1195 = vld [vmem:[#allocation8 + $0x20] sm:$0xff]
    %v1196 = vld [vmem:[#allocation8 + $0x28] sm:$0xff]
    %v1197 = vld [vmem:[#allocation8 + $0x30] sm:$0xff]
    %v1198 = vld [vmem:[#allocation8 + $0x38] sm:$0xff]
    %v1199 = vld [vmem:[#allocation8 + $0x40] sm:$0xff]
    %v1200 = vld [vmem:[#allocation8 + $0x48] sm:$0xff]
    %v1201 = vld [vmem:[#allocation8 + $0x50] sm:$0xff]
    %v1202 = vld [vmem:[#allocation8 + $0x58] sm:$0xff]
    %v1203 = vld [vmem:[#allocation8 + $0x60] sm:$0xff]
    %v1204 = vld [vmem:[#allocation8 + $0x68] sm:$0xff]
    %v1205 = vld [vmem:[#allocation8 + $0x70] sm:$0xff]
    %v1206 = vld [vmem:[#allocation8 + $0x78] sm:$0xff]
    %v1207 = vld [vmem:[#allocation8 + $0x80] sm:$0xff]
    %v1208 = vld [vmem:[#allocation8 + $0x88] sm:$0xff]
    %v1209 = vld [vmem:[#allocation8 + $0x90] sm:$0xff]
    %v1210 = vld [vmem:[#allocation8 + $0x98] sm:$0xff]
    %v1211 = vld [vmem:[#allocation8 + $0xa0] sm:$0xff]
    %v1212 = vld [vmem:[#allocation8 + $0xa8] sm:$0xff]
    %v1213 = vld [vmem:[#allocation8 + $0xb0] sm:$0xff]
    %v1214 = vld [vmem:[#allocation8 + $0xb8] sm:$0xff]
    %v1215 = vld [vmem:[#allocation8 + $0xc0] sm:$0xff]
    %v1216 = vld [vmem:[#allocation8 + $0xc8] sm:$0xff]
    %v1217 = vld [vmem:[#allocation8 + $0xd0] sm:$0xff]
    %v1218 = vld [vmem:[#allocation8 + $0xd8] sm:$0xff]
    %v1219 = vld [vmem:[#allocation8 + $0xe0] sm:$0xff]
    %v1220 = vld [vmem:[#allocation8 + $0xe8] sm:$0xff]
    %v1221 = vld [vmem:[#allocation8 + $0xf0] sm:$0xff]
    %v1222 = vld [vmem:[#allocation8 + $0xf8] sm:$0xff]
    %v1223 = vld [vmem:[#allocation8 + $0x100] sm:$0xff]
    %v1224 = vld [vmem:[#allocation8 + $0x108] sm:$0xff]
    %v1225 = vld [vmem:[#allocation8 + $0x110] sm:$0xff]
    %v1226 = vld [vmem:[#allocation8 + $0x118] sm:$0xff]
    %v1227 = vld [vmem:[#allocation8 + $0x120] sm:$0xff]
    %v1228 = vld [vmem:[#allocation8 + $0x128] sm:$0xff]
    %v1229 = vld [vmem:[#allocation8 + $0x130] sm:$0xff]
    %v1230 = vld [vmem:[#allocation8 + $0x138] sm:$0xff]
    %v1231 = vld [vmem:[#allocation8 + $0x140] sm:$0xff]
    %v1232 = vld [vmem:[#allocation8 + $0x148] sm:$0xff]
    %v1233 = vld [vmem:[#allocation8 + $0x150] sm:$0xff]
    %v1234 = vld [vmem:[#allocation8 + $0x158] sm:$0xff]
    %v1235 = vld [vmem:[#allocation8 + $0x160] sm:$0xff]
    %v1236 = vld [vmem:[#allocation8 + $0x168] sm:$0xff]
    %v1237 = vld [vmem:[#allocation8 + $0x170] sm:$0xff]
    %v1238 = vld [vmem:[#allocation8 + $0x178] sm:$0xff]
    %v1239 = vld [vmem:[#allocation8 + $0x180] sm:$0xff]
    %v1240 = vld [vmem:[#allocation8 + $0x188] sm:$0xff]
    %v1241 = vld [vmem:[#allocation8 + $0x190] sm:$0xff]
    %v1242 = vld [vmem:[#allocation8 + $0x198] sm:$0xff]
    %v1243 = vld [vmem:[#allocation8 + $0x1a0] sm:$0xff]
    %v1244 = vld [vmem:[#allocation8 + $0x1a8] sm:$0xff]
    %v1245 = vld [vmem:[#allocation8 + $0x1b0] sm:$0xff]
    %v1246 = vld [vmem:[#allocation8 + $0x1b8] sm:$0xff]
    %v1247 = vld [vmem:[#allocation8 + $0x1c0] sm:$0xff]
    %v1248 = vld [vmem:[#allocation8 + $0x1c8] sm:$0xff]
    %v1249 = vld [vmem:[#allocation8 + $0x1d0] sm:$0xff]
    %v1250 = vld [vmem:[#allocation8 + $0x1d8] sm:$0xff]
    %v1251 = vld [vmem:[#allocation8 + $0x1e0] sm:$0xff]
    %v1252 = vld [vmem:[#allocation8 + $0x1e8] sm:$0xff]
    %v1253 = vld [vmem:[#allocation8 + $0x1f0] sm:$0xff]
    %v1254 = vld [vmem:[#allocation8 + $0x1f8] sm:$0xff]
    %v1255 = vld [vmem:[%s25] sm:$0x3]
    %v1257 = vlaneseq
    %v1258 = vshrl.u32 %v1257, 7
    %v1259 = vsub.s32 0, %v1258
    %v1260 = vrot.slane %v1255, %v1259
    %v1261 = vlaneseq
    %v1262 = vshrl.u32 %v1261, 7
    %v1263 = vsub.s32 1, %v1262
    %v1264 = vrot.slane %v1255, %v1263
    %1267 = vmatprep.subr.mxu0 %v1192
    %1268 = vmatpush1.msra.mxu0 %v1191
    %1269 = vmatprep.subr.mxu0 %v1194
    %1270 = vmatpush1.msra.mxu0 %v1193
    %1271 = vmatprep.subr.mxu0 %v1196
    %1272 = vmatpush1.msra.mxu0 %v1195
    %1273 = vmatprep.subr.mxu0 %v1198
    %1274 = vmatpush1.msra.mxu0 %v1197
    %1275 = vmatprep.subr.mxu0 %v1200
    %1276 = vmatpush1.msra.mxu0 %v1199
    %1277 = vmatprep.subr.mxu0 %v1202
    %1278 = vmatpush1.msra.mxu0 %v1201
    %1279 = vmatprep.subr.mxu0 %v1204
    %1280 = vmatpush1.msra.mxu0 %v1203
    %1281 = vmatprep.subr.mxu0 %v1206
    %1282 = vmatpush1.msra.mxu0 %v1205
    %1283 = vmatprep.subr.mxu0 %v1208
    %1284 = vmatpush1.msra.mxu0 %v1207
    %1285 = vmatprep.subr.mxu0 %v1210
    %1286 = vmatpush1.msra.mxu0 %v1209
    %1287 = vmatprep.subr.mxu0 %v1212
    %1288 = vmatpush1.msra.mxu0 %v1211
    %1289 = vmatprep.subr.mxu0 %v1214
    %1290 = vmatpush1.msra.mxu0 %v1213
    %1291 = vmatprep.subr.mxu0 %v1216
    %1292 = vmatpush1.msra.mxu0 %v1215
    %1293 = vmatprep.subr.mxu0 %v1218
    %1294 = vmatpush1.msra.mxu0 %v1217
    %1295 = vmatprep.subr.mxu0 %v1220
    %1296 = vmatpush1.msra.mxu0 %v1219
    %1297 = vmatprep.subr.mxu0 %v1222
    %1298 = vmatpush1.msra.mxu0 %v1221
    %1299 = vmatprep.subr.mxu0 %v1224
    %1300 = vmatpush1.msra.mxu0 %v1223
    %1301 = vmatprep.subr.mxu0 %v1226
    %1302 = vmatpush1.msra.mxu0 %v1225
    %1303 = vmatprep.subr.mxu0 %v1228
    %1304 = vmatpush1.msra.mxu0 %v1227
    %1305 = vmatprep.subr.mxu0 %v1230
    %1306 = vmatpush1.msra.mxu0 %v1229
    %1307 = vmatprep.subr.mxu0 %v1232
    %1308 = vmatpush1.msra.mxu0 %v1231
    %1309 = vmatprep.subr.mxu0 %v1234
    %1310 = vmatpush1.msra.mxu0 %v1233
    %1311 = vmatprep.subr.mxu0 %v1236
    %1312 = vmatpush1.msra.mxu0 %v1235
    %1313 = vmatprep.subr.mxu0 %v1238
    %1314 = vmatpush1.msra.mxu0 %v1237
    %1315 = vmatprep.subr.mxu0 %v1240
    %1316 = vmatpush1.msra.mxu0 %v1239
    %1317 = vmatprep.subr.mxu0 %v1242
    %1318 = vmatpush1.msra.mxu0 %v1241
    %1319 = vmatprep.subr.mxu0 %v1244
    %1320 = vmatpush1.msra.mxu0 %v1243
    %1321 = vmatprep.subr.mxu0 %v1246
    %1322 = vmatpush1.msra.mxu0 %v1245
    %1323 = vmatprep.subr.mxu0 %v1248
    %1324 = vmatpush1.msra.mxu0 %v1247
    %1325 = vmatprep.subr.mxu0 %v1250
    %1326 = vmatpush1.msra.mxu0 %v1249
    %1327 = vmatprep.subr.mxu0 %v1252
    %1328 = vmatpush1.msra.mxu0 %v1251
    %1329 = vmatprep.subr.mxu0 %v1254
    %1330 = vmatpush1.msra.mxu0 %v1253
    %1331 = vmatprep.mubr.f32.mxu0 %v1190
    %1332 = vmatmul.mubr.f32.gmra.mrb[0].mxu0 %v1189
    %v1333 = vpop.f32.mrb[0].mxu0
    %v1334 = vadd.f32 %v1260, %v1333
    %v1335 = vpop.f32.mrb[0].mxu0
    %v1336 = vadd.f32 %v1264, %v1335
    %1337 = vdwg.mxu0
    %v1340 = vcombine.low %v1334, %v1336
    %v1342 = vunpack.c.l.s4 1983009808
    %v1343 = vunpack.c.0.s8 %v1342
    %v1344 = vlaneseq
    %v1345 = vshrl.u32 %v1344, 7
    %v1346 = vsub.s32 %v1343, %v1345
    %v1347 = vrot.slane %v1340, %v1346
    %1349 = vst [vmem:[#allocation10] sm:$0xf] %v1347
    %vm1350 = vcmp.gt.f32.partialorder %v1334, 0.0
    %vm1351 = vcmp.gt.f32.partialorder %v1336, 0.0
    %v1352 = vsel %vm1350, 1, 0
    %v1353 = vsel %vm1351, 1, 0
    %v1354 = vcvt.s32.f32 %v1352
    %v1355 = vcvt.s32.f32 %v1353
    %v1358 = vcombine.low %v1354, %v1355
    %v1360 = vunpack.c.l.s4 1983009808
    %v1361 = vunpack.c.0.s8 %v1360
    %v1362 = vlaneseq
    %v1363 = vshrl.u32 %v1362, 7
    %v1364 = vsub.s32 %v1361, %v1363
    %v1365 = vrot.slane %v1358, %v1364
    %1367 = vst [vmem:[#allocation11] sm:$0xf] %v1365
    // Predicated region
    $region122: #{tpu_custom_call.1} parent=1 // pred_check
      _
    $region123: #{tpu_custom_call.1} parent=1 // pred_check_branch
      %1369 = sbr.rel (0) target = $region125
    $region124: #{tpu_custom_call.1} parent=1 // pred_region
      %s1371 = ssub.s32 64, 64
      %1372 = vsyncadd [#allocation4], %s1371
      %s1374 = sshll.u32 [#allocation10], 4
      %s1375 = int_to_ptr.vmem [resolvable:$true] %s1374
      %1377 = dma.vmem_to_hbm [thread:$0]  %s1375, 64, %s26, [#allocation4]
    $region125: #{tpu_custom_call.1} parent=1 // pred_fallthru
      _
    // Predicated region
    $region126: #{tpu_custom_call.1} parent=1 // pred_check
      _
    $region127: #{tpu_custom_call.1} parent=1 // pred_check_branch
      %1379 = sbr.rel (0) target = $region129
    $region128: #{tpu_custom_call.1} parent=1 // pred_region
      %s1381 = ssub.s32 64, 64
      %1382 = vsyncadd [#allocation12], %s1381
      %s1384 = sshll.u32 [#allocation11], 4
      %s1385 = int_to_ptr.vmem [resolvable:$true] %s1384
      %1387 = dma.vmem_to_hbm [thread:$0]  %s1385, 64, %s27, [#allocation12]
    $region129: #{tpu_custom_call.1} parent=1 // pred_fallthru
      _
    // Predicated region
    $region130: #{tpu_custom_call.1} parent=1 // pred_check
      _
    $region131: #{tpu_custom_call.1} parent=1 // pred_check_branch
      %1389 = sbr.rel (0) target = $region133
    $region132: #{tpu_custom_call.1} parent=1 // pred_region
      %s1391 = ssub.s32 16, 16
      %1392 = vsyncadd [#allocation12], %s1391
      %s1394 = sshll.u32 [#allocation13], 4
      %s1395 = int_to_ptr.vmem [resolvable:$true] %s1394
      %1397 = dma.vmem_to_hbm [thread:$0]  %s1395, 16, %s28, [#allocation12]
    $region133: #{tpu_custom_call.1} parent=1 // pred_fallthru
      _
    // Predicated region
    $region134: #{tpu_custom_call.1} parent=1 // pred_check
      _
    $region135: #{tpu_custom_call.1} parent=1 // pred_check_branch
      %1399 = sbr.rel (0) target = $region137
    $region136: #{tpu_custom_call.1} parent=1 // pred_region
      %1400 = dma.done [#allocation4], 64
    $region137: #{tpu_custom_call.1} parent=1 // pred_fallthru
      _
    // Predicated region
    $region138: #{tpu_custom_call.1} parent=1 // pred_check
      _
    $region139: #{tpu_custom_call.1} parent=1 // pred_check_branch
      %1402 = sbr.rel (0) target = $region141
    $region140: #{tpu_custom_call.1} parent=1 // pred_region
      %1403 = dma.done [#allocation12], 64
    $region141: #{tpu_custom_call.1} parent=1 // pred_fallthru
      _
    // Predicated region
    $region142: #{tpu_custom_call.1} parent=1 // pred_check
      _
    $region143: #{tpu_custom_call.1} parent=1 // pred_check_branch
      %1405 = sbr.rel (0) target = $region145
    $region144: #{tpu_custom_call.1} parent=1 // pred_region
      %1406 = dma.done [#allocation12], 16
    $region145: #{tpu_custom_call.1} parent=1 // pred_fallthru
      _
    %1407 = vsyncpa [#allocation3], 1
    %1408 = vsyncpa [#allocation6], 1
    %1409 = vsyncpa [#allocation9], 1
    %1410 = vsyncpa [#allocation4], 1
    %1411 = vsyncpa [#allocation12], 1

</llo_original>
